<compile_context>
chip_gen: v7x
topology: tpu7x:2x2x1
jax: 0.10.0
libtpu: 0.0.40
codegen_flags: <defaults>
</compile_context>

<pallas_src>
import jax
import jax.numpy as jnp
from jax.experimental import pallas as pl
from jax.experimental.pallas import tpu as pltpu

IN_FEATURES = 3200
OUT_FEATURES = 10
PADDED_OUT = 128          # lane-dense output width
NEG_BIG = -1e30           # bias padding -> exp() underflows to exactly 0
DEFAULT_TILE_B = 512      # multiple of 128 (v5e MXU) and ~85% HBM roofline


def _round_up(n: int, m: int) -> int:
    return ((n + m - 1) // m) * m


def linear_logsoftmax_kernel(x_ref, wt_ref, b_ref, o_ref):
    # x_ref:  [TILE_B, 3200]   wt_ref: [3200, 128]   b_ref: [1, 128]
    # o_ref:  [TILE_B, 128]
    x = x_ref[...]

    # Linear: x @ W^T + b  (MXU, f32 accumulation). Padded columns get
    # 0-weight contributions plus a -1e30 bias -> exp() == 0 below.
    y = jnp.dot(x, wt_ref[...], preferred_element_type=jnp.float32) + b_ref[...]

    # Numerically-stable log-softmax over the class (lane) axis.
    m = jnp.max(y, axis=1, keepdims=True)
    z = y - m
    lse = jnp.log(jnp.sum(jnp.exp(z), axis=1, keepdims=True))
    o_ref[...] = (z - lse).astype(o_ref.dtype)


def prepare_params(weight, bias):
    """One-time parameter prep (hoisted out of the per-call forward path).

    weight: [10, 3200] f32 (PyTorch layout);  bias: [10] f32.
    Returns lane-padded wt [3200, 128] and bias [1, 128].
    """
    wt = jnp.zeros((IN_FEATURES, PADDED_OUT), jnp.float32)
    wt = wt.at[:, :OUT_FEATURES].set(weight.T.astype(jnp.float32))
    b = jnp.full((1, PADDED_OUT), NEG_BIG, dtype=jnp.float32)
    b = b.at[0, :OUT_FEATURES].set(bias.astype(jnp.float32))
    return wt, b


def derived_model10_forward(x, wt_padded, b_padded, *, tile_b=DEFAULT_TILE_B):
    """x: [B, 3200] f32; wt_padded: [3200, 128]; b_padded: [1, 128]."""
    B = x.shape[0]

    # Shrink the tile for tiny batches; keep it a multiple of 8 sublanes.
    tile_b = min(tile_b, _round_up(B, 8))
    padded_b = _round_up(B, tile_b)
    if padded_b != B:
        x = jnp.pad(x, ((0, padded_b - B), (0, 0)))
    n_tiles = pl.cdiv(padded_b, tile_b)

    cost = pl.CostEstimate(
        flops=2 * padded_b * IN_FEATURES * PADDED_OUT,
        transcendentals=padded_b * PADDED_OUT + padded_b,   # exp + log
        bytes_accessed=(padded_b * IN_FEATURES * 4          # x read
                        + IN_FEATURES * PADDED_OUT * 4      # weight (once)
                        + PADDED_OUT * 4                    # bias (once)
                        + padded_b * PADDED_OUT * 4),       # output write
    )

    out = pl.pallas_call(
        linear_logsoftmax_kernel,
        out_shape=jax.ShapeDtypeStruct((padded_b, PADDED_OUT), jnp.float32),
        grid=(n_tiles,),
        in_specs=[
            # x: streamed batch tiles, double-buffered by the pipeline.
            pl.BlockSpec((tile_b, IN_FEATURES), lambda i: (i, 0)),
            # weight / bias: constant block index -> resident in VMEM.
            pl.BlockSpec((IN_FEATURES, PADDED_OUT), lambda i: (0, 0)),
            pl.BlockSpec((1, PADDED_OUT), lambda i: (0, 0)),
        ],
        out_specs=pl.BlockSpec((tile_b, PADDED_OUT), lambda i: (i, 0)),
        compiler_params=pltpu.CompilerParams(
            dimension_semantics=("parallel",),   # megacore split on v7x
        ),
        cost_estimate=cost,
    )(x, wt_padded, b_padded)

    # Drop batch padding and the 118 padded classes.
    return out[:B, :OUT_FEATURES]


if __name__ == "__main__":
    key = jax.random.PRNGKey(0)
    k_x, k_w, k_b = jax.random.split(key, 3)

    B = 8
    x = jax.random.normal(k_x, (B, IN_FEATURES), dtype=jnp.float32)

    # PyTorch-like uniform(-1/sqrt(fan_in), 1/sqrt(fan_in)) init.
    bound = 1.0 / (IN_FEATURES ** 0.5)
    weight = jax.random.uniform(
        k_w, (OUT_FEATURES, IN_FEATURES), dtype=jnp.float32,
        minval=-bound, maxval=bound)
    bias = jax.random.uniform(
        k_b, (OUT_FEATURES,), dtype=jnp.float32, minval=-bound, maxval=bound)

    # One-time parameter prep (outside the forward path).
    wt_padded, b_padded = prepare_params(weight, bias)

    out = derived_model10_forward(x, wt_padded, b_padded)
    jax.block_until_ready(out)

    # Sanity check against pure-JAX reference.
    ref = jax.nn.log_softmax(x @ weight.T + bias, axis=1)
    assert out.shape == (B, OUT_FEATURES)
    assert jnp.allclose(out, ref, atol=1e-5, rtol=1e-5), (
        float(jnp.max(jnp.abs(out - ref))))

    print("KERNEL_OK")
</pallas_src>

<mosaic_0001>
module attributes {stable_mosaic.version = 11 : i64} {
  func.func @linear_logsoftmax_kernel(%arg0: i32, %arg1: memref<8x3200xf32, #tpu.memory_space<vmem>>, %arg2: memref<3200x128xf32, #tpu.memory_space<vmem>>, %arg3: memref<1x128xf32, #tpu.memory_space<vmem>>, %arg4: memref<8x128xf32, #tpu.memory_space<vmem>>) attributes {dimension_semantics = [#tpu.dimension_semantics<parallel>], iteration_bounds = array<i64: 1>, scalar_prefetch = 0 : i64, scratch_operands = 0 : i64, tpu.core_type = #tpu.core_type<tc>, window_params = [{transform_indices = @transform_0, window_bounds = array<i64: 8, 3200>}, {pipeline_mode = #tpu.pipeline_mode<synchronous>, transform_indices = @transform_1, window_bounds = array<i64: 3200, 128>}, {pipeline_mode = #tpu.pipeline_mode<synchronous>, transform_indices = @transform_2, window_bounds = array<i64: 1, 128>}, {transform_indices = @transform_3, window_bounds = array<i64: 8, 128>}]} {
    %c0 = arith.constant 0 : index
    %c0_0 = arith.constant 0 : index
    %0 = vector.load %arg1[%c0, %c0_0] : memref<8x3200xf32, #tpu.memory_space<vmem>>, vector<8x3200xf32>
    %c0_1 = arith.constant 0 : index
    %c0_2 = arith.constant 0 : index
    %1 = vector.load %arg2[%c0_1, %c0_2] : memref<3200x128xf32, #tpu.memory_space<vmem>>, vector<3200x128xf32>
    %cst = arith.constant dense<0.000000e+00> : vector<8x128xf32>
    %2 = tpu.matmul %0, %1, %cst {dimension_numbers = #tpu.dot_dimension_numbers<[1], [0], [0], [1], [0, 0, 1, 1], [], []>} : vector<8x3200xf32>, vector<3200x128xf32>, vector<8x128xf32> -> vector<8x128xf32>
    %c0_3 = arith.constant 0 : index
    %c0_4 = arith.constant 0 : index
    %3 = vector.load %arg3[%c0_3, %c0_4] : memref<1x128xf32, #tpu.memory_space<vmem>>, vector<1x128xf32>
    %4 = vector.broadcast %3 : vector<1x128xf32> to vector<8x128xf32>
    %5 = arith.addf %2, %4 : vector<8x128xf32>
    %cst_5 = arith.constant dense<0xFF800000> : vector<8xf32>
    %6 = vector.multi_reduction <maximumf>, %5, %cst_5 [1] : vector<8x128xf32> to vector<8xf32>
    %7 = vector.shape_cast %6 : vector<8xf32> to vector<8x1xf32>
    %8 = vector.broadcast %7 : vector<8x1xf32> to vector<8x128xf32>
    %9 = arith.subf %5, %8 : vector<8x128xf32>
    %10 = math.exp %9 : vector<8x128xf32>
    %cst_6 = arith.constant dense<0.000000e+00> : vector<8xf32>
    %11 = vector.multi_reduction <add>, %10, %cst_6 [1] : vector<8x128xf32> to vector<8xf32>
    %12 = vector.shape_cast %11 : vector<8xf32> to vector<8x1xf32>
    %13 = math.log %12 : vector<8x1xf32>
    %14 = vector.broadcast %13 : vector<8x1xf32> to vector<8x128xf32>
    %15 = arith.subf %9, %14 : vector<8x128xf32>
    %c0_7 = arith.constant 0 : index
    %c0_8 = arith.constant 0 : index
    %16 = vector.load %arg4[%c0_7, %c0_8] : memref<8x128xf32, #tpu.memory_space<vmem>>, vector<8x128xf32>
    tpu.vector_store %arg4[%c0_7, %c0_8], %15 {strides = array<i32>} : memref<8x128xf32, #tpu.memory_space<vmem>>, vector<8x128xf32>,
    return
  }
  func.func @transform_0(%arg0: i32) -> (i32, i32) {
    %c0_i32 = arith.constant 0 : i32
    %c0_i32_0 = arith.constant 0 : i32
    return %arg0, %c0_i32 : i32, i32
  }
  func.func @transform_1(%arg0: i32) -> (i32, i32) {
    %c0_i32 = arith.constant 0 : i32
    %c0_i32_0 = arith.constant 0 : i32
    %c0_i32_1 = arith.constant 0 : i32
    return %c0_i32, %c0_i32_0 : i32, i32
  }
  func.func @transform_2(%arg0: i32) -> (i32, i32) {
    %c0_i32 = arith.constant 0 : i32
    %c0_i32_0 = arith.constant 0 : i32
    %c0_i32_1 = arith.constant 0 : i32
    return %c0_i32, %c0_i32_0 : i32, i32
  }
  func.func @transform_3(%arg0: i32) -> (i32, i32) {
    %c0_i32 = arith.constant 0 : i32
    %c0_i32_0 = arith.constant 0 : i32
    return %arg0, %c0_i32 : i32, i32
  }
}

</mosaic_0001>

<llo_original>
// kernel: tpu_custom_call.1
$region0: #{tpu_custom_call.1}
  #allocation0 [shape = 'u32[]', space=smem, size = 0x4, offset = 0x4, fixed_abs, tag = 'smem constant byte address 0x4 - core index']
  #allocation1 [shape = 'u32[144,128]{1,0:T(1,128)}', space=vmem, size = 0x12000, scoped, tag = 'internal scratch']
  %s0 = inlined_call_operand.hbm [shape: f32[8,3200], index: 0, kind: input, shape index: {}]
  %s1 = inlined_call_operand.hbm [shape: f32[3200,128], index: 1, kind: input, shape index: {}]
  %s2 = inlined_call_operand.hbm [shape: f32[1,128], index: 2, kind: input, shape index: {}]
  %s3 = inlined_call_operand.hbm [shape: f32[8,128], index: 3, kind: output, shape index: {}]
  %s4 = sld [smem:[#allocation0]]
  $region34: #{tpu_custom_call.1} parent=0
    _
  %s6 = ssub.s32 1, %s4
  %s7 = scalar_select 0, %s6, %s4
  $region1: #{tpu_custom_call.1} parent=0
    #allocation2 [shape = 'u8[102400]{0}', space=vmem, size = 0x19000, scoped, tag = 'input window, operand 0, single buffered']
    #allocation3 [shape = 's32[1]{0}', space=sflag, size = 0x4, scoped, tag = 'scoped memory for tpu_custom_call.1']
    #allocation4 [shape = 's32[1]{0}', space=sflag, size = 0x4, scoped, tag = 'scoped memory for tpu_custom_call.1']
    #allocation5 [shape = 'u8[1638400]{0}', space=vmem, size = 0x190000, scoped, tag = 'input window, operand 1, single buffered']
    #allocation6 [shape = 's32[1]{0}', space=sflag, size = 0x4, scoped, tag = 'scoped memory for tpu_custom_call.1']
    #allocation7 [shape = 'u8[512]{0}', space=vmem, size = 0x400, scoped, tag = 'input window, operand 2, single buffered']
    #allocation8 [shape = 'u8[4096]{0}', space=vmem, size = 0x1000, scoped, tag = 'output window, operand 0, single buffered']
    %8 = vsyncpa [#allocation3], 0
    %9 = vsyncpa [#allocation6], 0
    %10 = vsyncpa [#allocation4], 0
    // Predicated region
    $region2: #{tpu_custom_call.1} parent=1 // pred_check
      _
    $region3: #{tpu_custom_call.1} parent=1 // pred_check_branch
      %12 = sbr.rel (0) target = $region5
    $region4: #{tpu_custom_call.1} parent=1 // pred_region
      %s14 = ssub.s32 3200, 3200
      %15 = vsyncadd [#allocation3], %s14
      %s17 = sshll.u32 [#allocation2], 4
      %s18 = int_to_ptr.vmem [resolvable:$true] %s17
      %20 = dma.hbm_to_vmem [thread:$0]  %s0, 3200, %s18, [#allocation3]
    $region5: #{tpu_custom_call.1} parent=1 // pred_fallthru
      _
    // Predicated region
    $region6: #{tpu_custom_call.1} parent=1 // pred_check
      _
    $region7: #{tpu_custom_call.1} parent=1 // pred_check_branch
      %22 = sbr.rel (0) target = $region9
    $region8: #{tpu_custom_call.1} parent=1 // pred_region
      %s24 = ssub.s32 51200, 51200
      %25 = vsyncadd [#allocation6], %s24
      %s26 = sshll.u32 [#allocation5], 4
      %s27 = int_to_ptr.vmem [resolvable:$true] %s26
      %32 = dma.hbm_to_vmem [thread:$0]  %s1, 51200, %s27, [#allocation6], 128, 128, 8
    $region9: #{tpu_custom_call.1} parent=1 // pred_fallthru
      _
    // Predicated region
    $region10: #{tpu_custom_call.1} parent=1 // pred_check
      _
    $region11: #{tpu_custom_call.1} parent=1 // pred_check_branch
      %34 = sbr.rel (0) target = $region13
    $region12: #{tpu_custom_call.1} parent=1 // pred_region
      %s36 = ssub.s32 16, 16
      %37 = vsyncadd [#allocation6], %s36
      %s39 = sshll.u32 [#allocation7], 4
      %s40 = int_to_ptr.vmem [resolvable:$true] %s39
      %42 = dma.hbm_to_vmem [thread:$0]  %s2, 16, %s40, [#allocation6]
    $region13: #{tpu_custom_call.1} parent=1 // pred_fallthru
      _
    // Predicated region
    $region14: #{tpu_custom_call.1} parent=1 // pred_check
      _
    $region15: #{tpu_custom_call.1} parent=1 // pred_check_branch
      %44 = sbr.rel (0) target = $region17
    $region16: #{tpu_custom_call.1} parent=1 // pred_region
      %45 = dma.done [#allocation3], 3200
    $region17: #{tpu_custom_call.1} parent=1 // pred_fallthru
      _
    // Predicated region
    $region18: #{tpu_custom_call.1} parent=1 // pred_check
      _
    $region19: #{tpu_custom_call.1} parent=1 // pred_check_branch
      %47 = sbr.rel (0) target = $region21
    $region20: #{tpu_custom_call.1} parent=1 // pred_region
      %48 = dma.done [#allocation6], 51200
    $region21: #{tpu_custom_call.1} parent=1 // pred_fallthru
      _
    // Predicated region
    $region22: #{tpu_custom_call.1} parent=1 // pred_check
      _
    $region23: #{tpu_custom_call.1} parent=1 // pred_check_branch
      %50 = sbr.rel (0) target = $region25
    $region24: #{tpu_custom_call.1} parent=1 // pred_region
      %51 = dma.done [#allocation6], 16
    $region25: #{tpu_custom_call.1} parent=1 // pred_fallthru
      _
    %v52 = vld [vmem:[#allocation2] sm:$0xff]
    %v53 = vld [vmem:[#allocation2 + $0x8] sm:$0xff]
    %v54 = vld [vmem:[#allocation2 + $0x10] sm:$0xff]
    %v55 = vld [vmem:[#allocation2 + $0x18] sm:$0xff]
    %v56 = vld [vmem:[#allocation2 + $0x20] sm:$0xff]
    %v57 = vld [vmem:[#allocation2 + $0x28] sm:$0xff]
    %v58 = vld [vmem:[#allocation2 + $0x30] sm:$0xff]
    %v59 = vld [vmem:[#allocation2 + $0x38] sm:$0xff]
    %v60 = vld [vmem:[#allocation2 + $0x40] sm:$0xff]
    %v61 = vld [vmem:[#allocation2 + $0x48] sm:$0xff]
    %v62 = vld [vmem:[#allocation2 + $0x50] sm:$0xff]
    %v63 = vld [vmem:[#allocation2 + $0x58] sm:$0xff]
    %v64 = vld [vmem:[#allocation2 + $0x60] sm:$0xff]
    %v65 = vld [vmem:[#allocation2 + $0x68] sm:$0xff]
    %v66 = vld [vmem:[#allocation2 + $0x70] sm:$0xff]
    %v67 = vld [vmem:[#allocation2 + $0x78] sm:$0xff]
    %v68 = vld [vmem:[#allocation2 + $0x80] sm:$0xff]
    %v69 = vld [vmem:[#allocation2 + $0x88] sm:$0xff]
    %v70 = vld [vmem:[#allocation2 + $0x90] sm:$0xff]
    %v71 = vld [vmem:[#allocation2 + $0x98] sm:$0xff]
    %v72 = vld [vmem:[#allocation2 + $0xa0] sm:$0xff]
    %v73 = vld [vmem:[#allocation2 + $0xa8] sm:$0xff]
    %v74 = vld [vmem:[#allocation2 + $0xb0] sm:$0xff]
    %v75 = vld [vmem:[#allocation2 + $0xb8] sm:$0xff]
    %v76 = vld [vmem:[#allocation2 + $0xc0] sm:$0xff]
    %v77 = vld [vmem:[#allocation5] sm:$0xff]
    %v78 = vld [vmem:[#allocation5 + $0x8] sm:$0xff]
    %v79 = vld [vmem:[#allocation5 + $0x10] sm:$0xff]
    %v80 = vld [vmem:[#allocation5 + $0x18] sm:$0xff]
    %v81 = vld [vmem:[#allocation5 + $0x20] sm:$0xff]
    %v82 = vld [vmem:[#allocation5 + $0x28] sm:$0xff]
    %v83 = vld [vmem:[#allocation5 + $0x30] sm:$0xff]
    %v84 = vld [vmem:[#allocation5 + $0x38] sm:$0xff]
    %v85 = vld [vmem:[#allocation5 + $0x40] sm:$0xff]
    %v86 = vld [vmem:[#allocation5 + $0x48] sm:$0xff]
    %v87 = vld [vmem:[#allocation5 + $0x50] sm:$0xff]
    %v88 = vld [vmem:[#allocation5 + $0x58] sm:$0xff]
    %v89 = vld [vmem:[#allocation5 + $0x60] sm:$0xff]
    %v90 = vld [vmem:[#allocation5 + $0x68] sm:$0xff]
    %v91 = vld [vmem:[#allocation5 + $0x70] sm:$0xff]
    %v92 = vld [vmem:[#allocation5 + $0x78] sm:$0xff]
    %v93 = vld [vmem:[#allocation5 + $0x80] sm:$0xff]
    %v94 = vld [vmem:[#allocation5 + $0x88] sm:$0xff]
    %v95 = vld [vmem:[#allocation5 + $0x90] sm:$0xff]
    %v96 = vld [vmem:[#allocation5 + $0x98] sm:$0xff]
    %v97 = vld [vmem:[#allocation5 + $0xa0] sm:$0xff]
    %v98 = vld [vmem:[#allocation5 + $0xa8] sm:$0xff]
    %v99 = vld [vmem:[#allocation5 + $0xb0] sm:$0xff]
    %v100 = vld [vmem:[#allocation5 + $0xb8] sm:$0xff]
    %v101 = vld [vmem:[#allocation5 + $0xc0] sm:$0xff]
    %v102 = vld [vmem:[#allocation5 + $0xc8] sm:$0xff]
    %v103 = vld [vmem:[#allocation5 + $0xd0] sm:$0xff]
    %v104 = vld [vmem:[#allocation5 + $0xd8] sm:$0xff]
    %v105 = vld [vmem:[#allocation5 + $0xe0] sm:$0xff]
    %v106 = vld [vmem:[#allocation5 + $0xe8] sm:$0xff]
    %v107 = vld [vmem:[#allocation5 + $0xf0] sm:$0xff]
    %v108 = vld [vmem:[#allocation5 + $0xf8] sm:$0xff]
    %v109 = vld [vmem:[#allocation5 + $0x100] sm:$0xff]
    %v110 = vld [vmem:[#allocation5 + $0x108] sm:$0xff]
    %v111 = vld [vmem:[#allocation5 + $0x110] sm:$0xff]
    %v112 = vld [vmem:[#allocation5 + $0x118] sm:$0xff]
    %v113 = vld [vmem:[#allocation5 + $0x120] sm:$0xff]
    %v114 = vld [vmem:[#allocation5 + $0x128] sm:$0xff]
    %v115 = vld [vmem:[#allocation5 + $0x130] sm:$0xff]
    %v116 = vld [vmem:[#allocation5 + $0x138] sm:$0xff]
    %v117 = vld [vmem:[#allocation5 + $0x140] sm:$0xff]
    %v118 = vld [vmem:[#allocation5 + $0x148] sm:$0xff]
    %v119 = vld [vmem:[#allocation5 + $0x150] sm:$0xff]
    %v120 = vld [vmem:[#allocation5 + $0x158] sm:$0xff]
    %v121 = vld [vmem:[#allocation5 + $0x160] sm:$0xff]
    %v122 = vld [vmem:[#allocation5 + $0x168] sm:$0xff]
    %v123 = vld [vmem:[#allocation5 + $0x170] sm:$0xff]
    %v124 = vld [vmem:[#allocation5 + $0x178] sm:$0xff]
    %v125 = vld [vmem:[#allocation5 + $0x180] sm:$0xff]
    %v126 = vld [vmem:[#allocation5 + $0x188] sm:$0xff]
    %v127 = vld [vmem:[#allocation5 + $0x190] sm:$0xff]
    %v128 = vld [vmem:[#allocation5 + $0x198] sm:$0xff]
    %v129 = vld [vmem:[#allocation5 + $0x1a0] sm:$0xff]
    %v130 = vld [vmem:[#allocation5 + $0x1a8] sm:$0xff]
    %v131 = vld [vmem:[#allocation5 + $0x1b0] sm:$0xff]
    %v132 = vld [vmem:[#allocation5 + $0x1b8] sm:$0xff]
    %v133 = vld [vmem:[#allocation5 + $0x1c0] sm:$0xff]
    %v134 = vld [vmem:[#allocation5 + $0x1c8] sm:$0xff]
    %v135 = vld [vmem:[#allocation5 + $0x1d0] sm:$0xff]
    %v136 = vld [vmem:[#allocation5 + $0x1d8] sm:$0xff]
    %v137 = vld [vmem:[#allocation5 + $0x1e0] sm:$0xff]
    %v138 = vld [vmem:[#allocation5 + $0x1e8] sm:$0xff]
    %v139 = vld [vmem:[#allocation5 + $0x1f0] sm:$0xff]
    %v140 = vld [vmem:[#allocation5 + $0x1f8] sm:$0xff]
    %v141 = vld [vmem:[#allocation5 + $0x200] sm:$0xff]
    %v142 = vld [vmem:[#allocation5 + $0x208] sm:$0xff]
    %v143 = vld [vmem:[#allocation5 + $0x210] sm:$0xff]
    %v144 = vld [vmem:[#allocation5 + $0x218] sm:$0xff]
    %v145 = vld [vmem:[#allocation5 + $0x220] sm:$0xff]
    %v146 = vld [vmem:[#allocation5 + $0x228] sm:$0xff]
    %v147 = vld [vmem:[#allocation5 + $0x230] sm:$0xff]
    %v148 = vld [vmem:[#allocation5 + $0x238] sm:$0xff]
    %v149 = vld [vmem:[#allocation5 + $0x240] sm:$0xff]
    %v150 = vld [vmem:[#allocation5 + $0x248] sm:$0xff]
    %v151 = vld [vmem:[#allocation5 + $0x250] sm:$0xff]
    %v152 = vld [vmem:[#allocation5 + $0x258] sm:$0xff]
    %v153 = vld [vmem:[#allocation5 + $0x260] sm:$0xff]
    %v154 = vld [vmem:[#allocation5 + $0x268] sm:$0xff]
    %v155 = vld [vmem:[#allocation5 + $0x270] sm:$0xff]
    %v156 = vld [vmem:[#allocation5 + $0x278] sm:$0xff]
    %v157 = vld [vmem:[#allocation5 + $0x280] sm:$0xff]
    %v158 = vld [vmem:[#allocation5 + $0x288] sm:$0xff]
    %v159 = vld [vmem:[#allocation5 + $0x290] sm:$0xff]
    %v160 = vld [vmem:[#allocation5 + $0x298] sm:$0xff]
    %v161 = vld [vmem:[#allocation5 + $0x2a0] sm:$0xff]
    %v162 = vld [vmem:[#allocation5 + $0x2a8] sm:$0xff]
    %v163 = vld [vmem:[#allocation5 + $0x2b0] sm:$0xff]
    %v164 = vld [vmem:[#allocation5 + $0x2b8] sm:$0xff]
    %v165 = vld [vmem:[#allocation5 + $0x2c0] sm:$0xff]
    %v166 = vld [vmem:[#allocation5 + $0x2c8] sm:$0xff]
    %v167 = vld [vmem:[#allocation5 + $0x2d0] sm:$0xff]
    %v168 = vld [vmem:[#allocation5 + $0x2d8] sm:$0xff]
    %v169 = vld [vmem:[#allocation5 + $0x2e0] sm:$0xff]
    %v170 = vld [vmem:[#allocation5 + $0x2e8] sm:$0xff]
    %v171 = vld [vmem:[#allocation5 + $0x2f0] sm:$0xff]
    %v172 = vld [vmem:[#allocation5 + $0x2f8] sm:$0xff]
    %v173 = vld [vmem:[#allocation5 + $0x300] sm:$0xff]
    %v174 = vld [vmem:[#allocation5 + $0x308] sm:$0xff]
    %v175 = vld [vmem:[#allocation5 + $0x310] sm:$0xff]
    %v176 = vld [vmem:[#allocation5 + $0x318] sm:$0xff]
    %v177 = vld [vmem:[#allocation5 + $0x320] sm:$0xff]
    %v178 = vld [vmem:[#allocation5 + $0x328] sm:$0xff]
    %v179 = vld [vmem:[#allocation5 + $0x330] sm:$0xff]
    %v180 = vld [vmem:[#allocation5 + $0x338] sm:$0xff]
    %v181 = vld [vmem:[#allocation5 + $0x340] sm:$0xff]
    %v182 = vld [vmem:[#allocation5 + $0x348] sm:$0xff]
    %v183 = vld [vmem:[#allocation5 + $0x350] sm:$0xff]
    %v184 = vld [vmem:[#allocation5 + $0x358] sm:$0xff]
    %v185 = vld [vmem:[#allocation5 + $0x360] sm:$0xff]
    %v186 = vld [vmem:[#allocation5 + $0x368] sm:$0xff]
    %v187 = vld [vmem:[#allocation5 + $0x370] sm:$0xff]
    %v188 = vld [vmem:[#allocation5 + $0x378] sm:$0xff]
    %v189 = vld [vmem:[#allocation5 + $0x380] sm:$0xff]
    %v190 = vld [vmem:[#allocation5 + $0x388] sm:$0xff]
    %v191 = vld [vmem:[#allocation5 + $0x390] sm:$0xff]
    %v192 = vld [vmem:[#allocation5 + $0x398] sm:$0xff]
    %v193 = vld [vmem:[#allocation5 + $0x3a0] sm:$0xff]
    %v194 = vld [vmem:[#allocation5 + $0x3a8] sm:$0xff]
    %v195 = vld [vmem:[#allocation5 + $0x3b0] sm:$0xff]
    %v196 = vld [vmem:[#allocation5 + $0x3b8] sm:$0xff]
    %v197 = vld [vmem:[#allocation5 + $0x3c0] sm:$0xff]
    %v198 = vld [vmem:[#allocation5 + $0x3c8] sm:$0xff]
    %v199 = vld [vmem:[#allocation5 + $0x3d0] sm:$0xff]
    %v200 = vld [vmem:[#allocation5 + $0x3d8] sm:$0xff]
    %v201 = vld [vmem:[#allocation5 + $0x3e0] sm:$0xff]
    %v202 = vld [vmem:[#allocation5 + $0x3e8] sm:$0xff]
    %v203 = vld [vmem:[#allocation5 + $0x3f0] sm:$0xff]
    %v204 = vld [vmem:[#allocation5 + $0x3f8] sm:$0xff]
    %v205 = vld [vmem:[#allocation5 + $0x400] sm:$0xff]
    %v206 = vld [vmem:[#allocation5 + $0x408] sm:$0xff]
    %v207 = vld [vmem:[#allocation5 + $0x410] sm:$0xff]
    %v208 = vld [vmem:[#allocation5 + $0x418] sm:$0xff]
    %v209 = vld [vmem:[#allocation5 + $0x420] sm:$0xff]
    %v210 = vld [vmem:[#allocation5 + $0x428] sm:$0xff]
    %v211 = vld [vmem:[#allocation5 + $0x430] sm:$0xff]
    %v212 = vld [vmem:[#allocation5 + $0x438] sm:$0xff]
    %v213 = vld [vmem:[#allocation5 + $0x440] sm:$0xff]
    %v214 = vld [vmem:[#allocation5 + $0x448] sm:$0xff]
    %v215 = vld [vmem:[#allocation5 + $0x450] sm:$0xff]
    %v216 = vld [vmem:[#allocation5 + $0x458] sm:$0xff]
    %v217 = vld [vmem:[#allocation5 + $0x460] sm:$0xff]
    %v218 = vld [vmem:[#allocation5 + $0x468] sm:$0xff]
    %v219 = vld [vmem:[#allocation5 + $0x470] sm:$0xff]
    %v220 = vld [vmem:[#allocation5 + $0x478] sm:$0xff]
    %v221 = vld [vmem:[#allocation5 + $0x480] sm:$0xff]
    %v222 = vld [vmem:[#allocation5 + $0x488] sm:$0xff]
    %v223 = vld [vmem:[#allocation5 + $0x490] sm:$0xff]
    %v224 = vld [vmem:[#allocation5 + $0x498] sm:$0xff]
    %v225 = vld [vmem:[#allocation5 + $0x4a0] sm:$0xff]
    %v226 = vld [vmem:[#allocation5 + $0x4a8] sm:$0xff]
    %v227 = vld [vmem:[#allocation5 + $0x4b0] sm:$0xff]
    %v228 = vld [vmem:[#allocation5 + $0x4b8] sm:$0xff]
    %v229 = vld [vmem:[#allocation5 + $0x4c0] sm:$0xff]
    %v230 = vld [vmem:[#allocation5 + $0x4c8] sm:$0xff]
    %v231 = vld [vmem:[#allocation5 + $0x4d0] sm:$0xff]
    %v232 = vld [vmem:[#allocation5 + $0x4d8] sm:$0xff]
    %v233 = vld [vmem:[#allocation5 + $0x4e0] sm:$0xff]
    %v234 = vld [vmem:[#allocation5 + $0x4e8] sm:$0xff]
    %v235 = vld [vmem:[#allocation5 + $0x4f0] sm:$0xff]
    %v236 = vld [vmem:[#allocation5 + $0x4f8] sm:$0xff]
    %v237 = vld [vmem:[#allocation5 + $0x500] sm:$0xff]
    %v238 = vld [vmem:[#allocation5 + $0x508] sm:$0xff]
    %v239 = vld [vmem:[#allocation5 + $0x510] sm:$0xff]
    %v240 = vld [vmem:[#allocation5 + $0x518] sm:$0xff]
    %v241 = vld [vmem:[#allocation5 + $0x520] sm:$0xff]
    %v242 = vld [vmem:[#allocation5 + $0x528] sm:$0xff]
    %v243 = vld [vmem:[#allocation5 + $0x530] sm:$0xff]
    %v244 = vld [vmem:[#allocation5 + $0x538] sm:$0xff]
    %v245 = vld [vmem:[#allocation5 + $0x540] sm:$0xff]
    %v246 = vld [vmem:[#allocation5 + $0x548] sm:$0xff]
    %v247 = vld [vmem:[#allocation5 + $0x550] sm:$0xff]
    %v248 = vld [vmem:[#allocation5 + $0x558] sm:$0xff]
    %v249 = vld [vmem:[#allocation5 + $0x560] sm:$0xff]
    %v250 = vld [vmem:[#allocation5 + $0x568] sm:$0xff]
    %v251 = vld [vmem:[#allocation5 + $0x570] sm:$0xff]
    %v252 = vld [vmem:[#allocation5 + $0x578] sm:$0xff]
    %v253 = vld [vmem:[#allocation5 + $0x580] sm:$0xff]
    %v254 = vld [vmem:[#allocation5 + $0x588] sm:$0xff]
    %v255 = vld [vmem:[#allocation5 + $0x590] sm:$0xff]
    %v256 = vld [vmem:[#allocation5 + $0x598] sm:$0xff]
    %v257 = vld [vmem:[#allocation5 + $0x5a0] sm:$0xff]
    %v258 = vld [vmem:[#allocation5 + $0x5a8] sm:$0xff]
    %v259 = vld [vmem:[#allocation5 + $0x5b0] sm:$0xff]
    %v260 = vld [vmem:[#allocation5 + $0x5b8] sm:$0xff]
    %v261 = vld [vmem:[#allocation5 + $0x5c0] sm:$0xff]
    %v262 = vld [vmem:[#allocation5 + $0x5c8] sm:$0xff]
    %v263 = vld [vmem:[#allocation5 + $0x5d0] sm:$0xff]
    %v264 = vld [vmem:[#allocation5 + $0x5d8] sm:$0xff]
    %v265 = vld [vmem:[#allocation5 + $0x5e0] sm:$0xff]
    %v266 = vld [vmem:[#allocation5 + $0x5e8] sm:$0xff]
    %v267 = vld [vmem:[#allocation5 + $0x5f0] sm:$0xff]
    %v268 = vld [vmem:[#allocation5 + $0x5f8] sm:$0xff]
    %v269 = vld [vmem:[#allocation5 + $0x600] sm:$0xff]
    %v270 = vld [vmem:[#allocation5 + $0x608] sm:$0xff]
    %v271 = vld [vmem:[#allocation5 + $0x610] sm:$0xff]
    %v272 = vld [vmem:[#allocation5 + $0x618] sm:$0xff]
    %v273 = vld [vmem:[#allocation5 + $0x620] sm:$0xff]
    %v274 = vld [vmem:[#allocation5 + $0x628] sm:$0xff]
    %v275 = vld [vmem:[#allocation5 + $0x630] sm:$0xff]
    %v276 = vld [vmem:[#allocation5 + $0x638] sm:$0xff]
    %v277 = vld [vmem:[#allocation5 + $0x640] sm:$0xff]
    %v278 = vld [vmem:[#allocation5 + $0x648] sm:$0xff]
    %v279 = vld [vmem:[#allocation5 + $0x650] sm:$0xff]
    %v280 = vld [vmem:[#allocation5 + $0x658] sm:$0xff]
    %v281 = vld [vmem:[#allocation5 + $0x660] sm:$0xff]
    %v282 = vld [vmem:[#allocation5 + $0x668] sm:$0xff]
    %v283 = vld [vmem:[#allocation5 + $0x670] sm:$0xff]
    %v284 = vld [vmem:[#allocation5 + $0x678] sm:$0xff]
    %v285 = vld [vmem:[#allocation5 + $0x680] sm:$0xff]
    %v286 = vld [vmem:[#allocation5 + $0x688] sm:$0xff]
    %v287 = vld [vmem:[#allocation5 + $0x690] sm:$0xff]
    %v288 = vld [vmem:[#allocation5 + $0x698] sm:$0xff]
    %v289 = vld [vmem:[#allocation5 + $0x6a0] sm:$0xff]
    %v290 = vld [vmem:[#allocation5 + $0x6a8] sm:$0xff]
    %v291 = vld [vmem:[#allocation5 + $0x6b0] sm:$0xff]
    %v292 = vld [vmem:[#allocation5 + $0x6b8] sm:$0xff]
    %v293 = vld [vmem:[#allocation5 + $0x6c0] sm:$0xff]
    %v294 = vld [vmem:[#allocation5 + $0x6c8] sm:$0xff]
    %v295 = vld [vmem:[#allocation5 + $0x6d0] sm:$0xff]
    %v296 = vld [vmem:[#allocation5 + $0x6d8] sm:$0xff]
    %v297 = vld [vmem:[#allocation5 + $0x6e0] sm:$0xff]
    %v298 = vld [vmem:[#allocation5 + $0x6e8] sm:$0xff]
    %v299 = vld [vmem:[#allocation5 + $0x6f0] sm:$0xff]
    %v300 = vld [vmem:[#allocation5 + $0x6f8] sm:$0xff]
    %v301 = vld [vmem:[#allocation5 + $0x700] sm:$0xff]
    %v302 = vld [vmem:[#allocation5 + $0x708] sm:$0xff]
    %v303 = vld [vmem:[#allocation5 + $0x710] sm:$0xff]
    %v304 = vld [vmem:[#allocation5 + $0x718] sm:$0xff]
    %v305 = vld [vmem:[#allocation5 + $0x720] sm:$0xff]
    %v306 = vld [vmem:[#allocation5 + $0x728] sm:$0xff]
    %v307 = vld [vmem:[#allocation5 + $0x730] sm:$0xff]
    %v308 = vld [vmem:[#allocation5 + $0x738] sm:$0xff]
    %v309 = vld [vmem:[#allocation5 + $0x740] sm:$0xff]
    %v310 = vld [vmem:[#allocation5 + $0x748] sm:$0xff]
    %v311 = vld [vmem:[#allocation5 + $0x750] sm:$0xff]
    %v312 = vld [vmem:[#allocation5 + $0x758] sm:$0xff]
    %v313 = vld [vmem:[#allocation5 + $0x760] sm:$0xff]
    %v314 = vld [vmem:[#allocation5 + $0x768] sm:$0xff]
    %v315 = vld [vmem:[#allocation5 + $0x770] sm:$0xff]
    %v316 = vld [vmem:[#allocation5 + $0x778] sm:$0xff]
    %v317 = vld [vmem:[#allocation5 + $0x780] sm:$0xff]
    %v318 = vld [vmem:[#allocation5 + $0x788] sm:$0xff]
    %v319 = vld [vmem:[#allocation5 + $0x790] sm:$0xff]
    %v320 = vld [vmem:[#allocation5 + $0x798] sm:$0xff]
    %v321 = vld [vmem:[#allocation5 + $0x7a0] sm:$0xff]
    %v322 = vld [vmem:[#allocation5 + $0x7a8] sm:$0xff]
    %v323 = vld [vmem:[#allocation5 + $0x7b0] sm:$0xff]
    %v324 = vld [vmem:[#allocation5 + $0x7b8] sm:$0xff]
    %v325 = vld [vmem:[#allocation5 + $0x7c0] sm:$0xff]
    %v326 = vld [vmem:[#allocation5 + $0x7c8] sm:$0xff]
    %v327 = vld [vmem:[#allocation5 + $0x7d0] sm:$0xff]
    %v328 = vld [vmem:[#allocation5 + $0x7d8] sm:$0xff]
    %v329 = vld [vmem:[#allocation5 + $0x7e0] sm:$0xff]
    %v330 = vld [vmem:[#allocation5 + $0x7e8] sm:$0xff]
    %v331 = vld [vmem:[#allocation5 + $0x7f0] sm:$0xff]
    %v332 = vld [vmem:[#allocation5 + $0x7f8] sm:$0xff]
    %v333 = vld [vmem:[#allocation5 + $0x800] sm:$0xff]
    %v334 = vld [vmem:[#allocation5 + $0x808] sm:$0xff]
    %v335 = vld [vmem:[#allocation5 + $0x810] sm:$0xff]
    %v336 = vld [vmem:[#allocation5 + $0x818] sm:$0xff]
    %v337 = vld [vmem:[#allocation5 + $0x820] sm:$0xff]
    %v338 = vld [vmem:[#allocation5 + $0x828] sm:$0xff]
    %v339 = vld [vmem:[#allocation5 + $0x830] sm:$0xff]
    %v340 = vld [vmem:[#allocation5 + $0x838] sm:$0xff]
    %v341 = vld [vmem:[#allocation5 + $0x840] sm:$0xff]
    %v342 = vld [vmem:[#allocation5 + $0x848] sm:$0xff]
    %v343 = vld [vmem:[#allocation5 + $0x850] sm:$0xff]
    %v344 = vld [vmem:[#allocation5 + $0x858] sm:$0xff]
    %v345 = vld [vmem:[#allocation5 + $0x860] sm:$0xff]
    %v346 = vld [vmem:[#allocation5 + $0x868] sm:$0xff]
    %v347 = vld [vmem:[#allocation5 + $0x870] sm:$0xff]
    %v348 = vld [vmem:[#allocation5 + $0x878] sm:$0xff]
    %v349 = vld [vmem:[#allocation5 + $0x880] sm:$0xff]
    %v350 = vld [vmem:[#allocation5 + $0x888] sm:$0xff]
    %v351 = vld [vmem:[#allocation5 + $0x890] sm:$0xff]
    %v352 = vld [vmem:[#allocation5 + $0x898] sm:$0xff]
    %v353 = vld [vmem:[#allocation5 + $0x8a0] sm:$0xff]
    %v354 = vld [vmem:[#allocation5 + $0x8a8] sm:$0xff]
    %v355 = vld [vmem:[#allocation5 + $0x8b0] sm:$0xff]
    %v356 = vld [vmem:[#allocation5 + $0x8b8] sm:$0xff]
    %v357 = vld [vmem:[#allocation5 + $0x8c0] sm:$0xff]
    %v358 = vld [vmem:[#allocation5 + $0x8c8] sm:$0xff]
    %v359 = vld [vmem:[#allocation5 + $0x8d0] sm:$0xff]
    %v360 = vld [vmem:[#allocation5 + $0x8d8] sm:$0xff]
    %v361 = vld [vmem:[#allocation5 + $0x8e0] sm:$0xff]
    %v362 = vld [vmem:[#allocation5 + $0x8e8] sm:$0xff]
    %v363 = vld [vmem:[#allocation5 + $0x8f0] sm:$0xff]
    %v364 = vld [vmem:[#allocation5 + $0x8f8] sm:$0xff]
    %v365 = vld [vmem:[#allocation5 + $0x900] sm:$0xff]
    %v366 = vld [vmem:[#allocation5 + $0x908] sm:$0xff]
    %v367 = vld [vmem:[#allocation5 + $0x910] sm:$0xff]
    %v368 = vld [vmem:[#allocation5 + $0x918] sm:$0xff]
    %v369 = vld [vmem:[#allocation5 + $0x920] sm:$0xff]
    %v370 = vld [vmem:[#allocation5 + $0x928] sm:$0xff]
    %v371 = vld [vmem:[#allocation5 + $0x930] sm:$0xff]
    %v372 = vld [vmem:[#allocation5 + $0x938] sm:$0xff]
    %v373 = vld [vmem:[#allocation5 + $0x940] sm:$0xff]
    %v374 = vld [vmem:[#allocation5 + $0x948] sm:$0xff]
    %v375 = vld [vmem:[#allocation5 + $0x950] sm:$0xff]
    %v376 = vld [vmem:[#allocation5 + $0x958] sm:$0xff]
    %v377 = vld [vmem:[#allocation5 + $0x960] sm:$0xff]
    %v378 = vld [vmem:[#allocation5 + $0x968] sm:$0xff]
    %v379 = vld [vmem:[#allocation5 + $0x970] sm:$0xff]
    %v380 = vld [vmem:[#allocation5 + $0x978] sm:$0xff]
    %v381 = vld [vmem:[#allocation5 + $0x980] sm:$0xff]
    %v382 = vld [vmem:[#allocation5 + $0x988] sm:$0xff]
    %v383 = vld [vmem:[#allocation5 + $0x990] sm:$0xff]
    %v384 = vld [vmem:[#allocation5 + $0x998] sm:$0xff]
    %v385 = vld [vmem:[#allocation5 + $0x9a0] sm:$0xff]
    %v386 = vld [vmem:[#allocation5 + $0x9a8] sm:$0xff]
    %v387 = vld [vmem:[#allocation5 + $0x9b0] sm:$0xff]
    %v388 = vld [vmem:[#allocation5 + $0x9b8] sm:$0xff]
    %v389 = vld [vmem:[#allocation5 + $0x9c0] sm:$0xff]
    %v390 = vld [vmem:[#allocation5 + $0x9c8] sm:$0xff]
    %v391 = vld [vmem:[#allocation5 + $0x9d0] sm:$0xff]
    %v392 = vld [vmem:[#allocation5 + $0x9d8] sm:$0xff]
    %v393 = vld [vmem:[#allocation5 + $0x9e0] sm:$0xff]
    %v394 = vld [vmem:[#allocation5 + $0x9e8] sm:$0xff]
    %v395 = vld [vmem:[#allocation5 + $0x9f0] sm:$0xff]
    %v396 = vld [vmem:[#allocation5 + $0x9f8] sm:$0xff]
    %v397 = vld [vmem:[#allocation5 + $0xa00] sm:$0xff]
    %v398 = vld [vmem:[#allocation5 + $0xa08] sm:$0xff]
    %v399 = vld [vmem:[#allocation5 + $0xa10] sm:$0xff]
    %v400 = vld [vmem:[#allocation5 + $0xa18] sm:$0xff]
    %v401 = vld [vmem:[#allocation5 + $0xa20] sm:$0xff]
    %v402 = vld [vmem:[#allocation5 + $0xa28] sm:$0xff]
    %v403 = vld [vmem:[#allocation5 + $0xa30] sm:$0xff]
    %v404 = vld [vmem:[#allocation5 + $0xa38] sm:$0xff]
    %v405 = vld [vmem:[#allocation5 + $0xa40] sm:$0xff]
    %v406 = vld [vmem:[#allocation5 + $0xa48] sm:$0xff]
    %v407 = vld [vmem:[#allocation5 + $0xa50] sm:$0xff]
    %v408 = vld [vmem:[#allocation5 + $0xa58] sm:$0xff]
    %v409 = vld [vmem:[#allocation5 + $0xa60] sm:$0xff]
    %v410 = vld [vmem:[#allocation5 + $0xa68] sm:$0xff]
    %v411 = vld [vmem:[#allocation5 + $0xa70] sm:$0xff]
    %v412 = vld [vmem:[#allocation5 + $0xa78] sm:$0xff]
    %v413 = vld [vmem:[#allocation5 + $0xa80] sm:$0xff]
    %v414 = vld [vmem:[#allocation5 + $0xa88] sm:$0xff]
    %v415 = vld [vmem:[#allocation5 + $0xa90] sm:$0xff]
    %v416 = vld [vmem:[#allocation5 + $0xa98] sm:$0xff]
    %v417 = vld [vmem:[#allocation5 + $0xaa0] sm:$0xff]
    %v418 = vld [vmem:[#allocation5 + $0xaa8] sm:$0xff]
    %v419 = vld [vmem:[#allocation5 + $0xab0] sm:$0xff]
    %v420 = vld [vmem:[#allocation5 + $0xab8] sm:$0xff]
    %v421 = vld [vmem:[#allocation5 + $0xac0] sm:$0xff]
    %v422 = vld [vmem:[#allocation5 + $0xac8] sm:$0xff]
    %v423 = vld [vmem:[#allocation5 + $0xad0] sm:$0xff]
    %v424 = vld [vmem:[#allocation5 + $0xad8] sm:$0xff]
    %v425 = vld [vmem:[#allocation5 + $0xae0] sm:$0xff]
    %v426 = vld [vmem:[#allocation5 + $0xae8] sm:$0xff]
    %v427 = vld [vmem:[#allocation5 + $0xaf0] sm:$0xff]
    %v428 = vld [vmem:[#allocation5 + $0xaf8] sm:$0xff]
    %v429 = vld [vmem:[#allocation5 + $0xb00] sm:$0xff]
    %v430 = vld [vmem:[#allocation5 + $0xb08] sm:$0xff]
    %v431 = vld [vmem:[#allocation5 + $0xb10] sm:$0xff]
    %v432 = vld [vmem:[#allocation5 + $0xb18] sm:$0xff]
    %v433 = vld [vmem:[#allocation5 + $0xb20] sm:$0xff]
    %v434 = vld [vmem:[#allocation5 + $0xb28] sm:$0xff]
    %v435 = vld [vmem:[#allocation5 + $0xb30] sm:$0xff]
    %v436 = vld [vmem:[#allocation5 + $0xb38] sm:$0xff]
    %v437 = vld [vmem:[#allocation5 + $0xb40] sm:$0xff]
    %v438 = vld [vmem:[#allocation5 + $0xb48] sm:$0xff]
    %v439 = vld [vmem:[#allocation5 + $0xb50] sm:$0xff]
    %v440 = vld [vmem:[#allocation5 + $0xb58] sm:$0xff]
    %v441 = vld [vmem:[#allocation5 + $0xb60] sm:$0xff]
    %v442 = vld [vmem:[#allocation5 + $0xb68] sm:$0xff]
    %v443 = vld [vmem:[#allocation5 + $0xb70] sm:$0xff]
    %v444 = vld [vmem:[#allocation5 + $0xb78] sm:$0xff]
    %v445 = vld [vmem:[#allocation5 + $0xb80] sm:$0xff]
    %v446 = vld [vmem:[#allocation5 + $0xb88] sm:$0xff]
    %v447 = vld [vmem:[#allocation5 + $0xb90] sm:$0xff]
    %v448 = vld [vmem:[#allocation5 + $0xb98] sm:$0xff]
    %v449 = vld [vmem:[#allocation5 + $0xba0] sm:$0xff]
    %v450 = vld [vmem:[#allocation5 + $0xba8] sm:$0xff]
    %v451 = vld [vmem:[#allocation5 + $0xbb0] sm:$0xff]
    %v452 = vld [vmem:[#allocation5 + $0xbb8] sm:$0xff]
    %v453 = vld [vmem:[#allocation5 + $0xbc0] sm:$0xff]
    %v454 = vld [vmem:[#allocation5 + $0xbc8] sm:$0xff]
    %v455 = vld [vmem:[#allocation5 + $0xbd0] sm:$0xff]
    %v456 = vld [vmem:[#allocation5 + $0xbd8] sm:$0xff]
    %v457 = vld [vmem:[#allocation5 + $0xbe0] sm:$0xff]
    %v458 = vld [vmem:[#allocation5 + $0xbe8] sm:$0xff]
    %v459 = vld [vmem:[#allocation5 + $0xbf0] sm:$0xff]
    %v460 = vld [vmem:[#allocation5 + $0xbf8] sm:$0xff]
    %v461 = vld [vmem:[#allocation5 + $0xc00] sm:$0xff]
    %v462 = vld [vmem:[#allocation5 + $0xc08] sm:$0xff]
    %v463 = vld [vmem:[#allocation5 + $0xc10] sm:$0xff]
    %v464 = vld [vmem:[#allocation5 + $0xc18] sm:$0xff]
    %v465 = vld [vmem:[#allocation5 + $0xc20] sm:$0xff]
    %v466 = vld [vmem:[#allocation5 + $0xc28] sm:$0xff]
    %v467 = vld [vmem:[#allocation5 + $0xc30] sm:$0xff]
    %v468 = vld [vmem:[#allocation5 + $0xc38] sm:$0xff]
    %v469 = vld [vmem:[#allocation5 + $0xc40] sm:$0xff]
    %v470 = vld [vmem:[#allocation5 + $0xc48] sm:$0xff]
    %v471 = vld [vmem:[#allocation5 + $0xc50] sm:$0xff]
    %v472 = vld [vmem:[#allocation5 + $0xc58] sm:$0xff]
    %v473 = vld [vmem:[#allocation5 + $0xc60] sm:$0xff]
    %v474 = vld [vmem:[#allocation5 + $0xc68] sm:$0xff]
    %v475 = vld [vmem:[#allocation5 + $0xc70] sm:$0xff]
    %v476 = vld [vmem:[#allocation5 + $0xc78] sm:$0xff]
    %v477 = vld [vmem:[#allocation7] sm:$0x1]
    %v479 = vlaneseq
    %v480 = vshrl.u32 %v479, 7
    %v481 = vsub.s32 0, %v480
    %v482 = vrot.slane %v477, %v481
    %484 = vmatprep.subr.mxu0 0.0
    %485 = vmatpush1.msra.mxu0 %v77
    %486 = vmatprep.subr.mxu0 0.0
    %487 = vmatpush1.msra.mxu0 %v78
    %488 = vmatprep.subr.mxu0 0.0
    %489 = vmatpush1.msra.mxu0 %v79
    %490 = vmatprep.subr.mxu0 0.0
    %491 = vmatpush1.msra.mxu0 %v80
    %492 = vmatprep.subr.mxu0 0.0
    %493 = vmatpush1.msra.mxu0 %v81
    %494 = vmatprep.subr.mxu0 0.0
    %495 = vmatpush1.msra.mxu0 %v82
    %496 = vmatprep.subr.mxu0 0.0
    %497 = vmatpush1.msra.mxu0 %v83
    %498 = vmatprep.subr.mxu0 0.0
    %499 = vmatpush1.msra.mxu0 %v84
    %500 = vmatprep.subr.mxu0 0.0
    %501 = vmatpush1.msra.mxu0 %v85
    %502 = vmatprep.subr.mxu0 0.0
    %503 = vmatpush1.msra.mxu0 %v86
    %504 = vmatprep.subr.mxu0 0.0
    %505 = vmatpush1.msra.mxu0 %v87
    %506 = vmatprep.subr.mxu0 0.0
    %507 = vmatpush1.msra.mxu0 %v88
    %508 = vmatprep.subr.mxu0 0.0
    %509 = vmatpush1.msra.mxu0 %v89
    %510 = vmatprep.subr.mxu0 0.0
    %511 = vmatpush1.msra.mxu0 %v90
    %512 = vmatprep.subr.mxu0 0.0
    %513 = vmatpush1.msra.mxu0 %v91
    %514 = vmatprep.subr.mxu0 0.0
    %515 = vmatpush1.msra.mxu0 %v92
    %516 = vmatprep.subr.mxu0 0.0
    %517 = vmatpush1.msra.mxu0 %v93
    %518 = vmatprep.subr.mxu0 0.0
    %519 = vmatpush1.msra.mxu0 %v94
    %520 = vmatprep.subr.mxu0 0.0
    %521 = vmatpush1.msra.mxu0 %v95
    %522 = vmatprep.subr.mxu0 0.0
    %523 = vmatpush1.msra.mxu0 %v96
    %524 = vmatprep.subr.mxu0 0.0
    %525 = vmatpush1.msra.mxu0 %v97
    %526 = vmatprep.subr.mxu0 0.0
    %527 = vmatpush1.msra.mxu0 %v98
    %528 = vmatprep.subr.mxu0 0.0
    %529 = vmatpush1.msra.mxu0 %v99
    %530 = vmatprep.subr.mxu0 0.0
    %531 = vmatpush1.msra.mxu0 %v100
    %532 = vmatprep.subr.mxu0 0.0
    %533 = vmatpush1.msra.mxu0 %v101
    %534 = vmatprep.subr.mxu0 0.0
    %535 = vmatpush1.msra.mxu0 %v102
    %536 = vmatprep.subr.mxu0 0.0
    %537 = vmatpush1.msra.mxu0 %v103
    %538 = vmatprep.subr.mxu0 0.0
    %539 = vmatpush1.msra.mxu0 %v104
    %540 = vmatprep.subr.mxu0 0.0
    %541 = vmatpush1.msra.mxu0 %v105
    %542 = vmatprep.subr.mxu0 0.0
    %543 = vmatpush1.msra.mxu0 %v106
    %544 = vmatprep.subr.mxu0 0.0
    %545 = vmatpush1.msra.mxu0 %v107
    %546 = vmatprep.subr.mxu0 0.0
    %547 = vmatpush1.msra.mxu0 %v108
    %548 = vmatprep.mubr.f32.mxu0 %v53
    %549 = vmatmul.mubr.f32.gmra.mrb[0].mxu0 %v52
    %v550 = vpop.f32.mrb[0].mxu0
    %v551 = vadd.f32 %v482, %v550
    %v552 = vpop.f32.mrb[0].mxu0
    %553 = vdwg.mxu0
    %554 = vmatprep.subr.mxu0 0.0
    %555 = vmatpush1.msra.mxu0 %v109
    %556 = vmatprep.subr.mxu0 0.0
    %557 = vmatpush1.msra.mxu0 %v110
    %558 = vmatprep.subr.mxu0 0.0
    %559 = vmatpush1.msra.mxu0 %v111
    %560 = vmatprep.subr.mxu0 0.0
    %561 = vmatpush1.msra.mxu0 %v112
    %562 = vmatprep.subr.mxu0 0.0
    %563 = vmatpush1.msra.mxu0 %v113
    %564 = vmatprep.subr.mxu0 0.0
    %565 = vmatpush1.msra.mxu0 %v114
    %566 = vmatprep.subr.mxu0 0.0
    %567 = vmatpush1.msra.mxu0 %v115
    %568 = vmatprep.subr.mxu0 0.0
    %569 = vmatpush1.msra.mxu0 %v116
    %570 = vmatprep.subr.mxu0 0.0
    %571 = vmatpush1.msra.mxu0 %v117
    %572 = vmatprep.subr.mxu0 0.0
    %573 = vmatpush1.msra.mxu0 %v118
    %574 = vmatprep.subr.mxu0 0.0
    %575 = vmatpush1.msra.mxu0 %v119
    %576 = vmatprep.subr.mxu0 0.0
    %577 = vmatpush1.msra.mxu0 %v120
    %578 = vmatprep.subr.mxu0 0.0
    %579 = vmatpush1.msra.mxu0 %v121
    %580 = vmatprep.subr.mxu0 0.0
    %581 = vmatpush1.msra.mxu0 %v122
    %582 = vmatprep.subr.mxu0 0.0
    %583 = vmatpush1.msra.mxu0 %v123
    %584 = vmatprep.subr.mxu0 0.0
    %585 = vmatpush1.msra.mxu0 %v124
    %586 = vmatprep.subr.mxu0 0.0
    %587 = vmatpush1.msra.mxu0 %v125
    %588 = vmatprep.subr.mxu0 0.0
    %589 = vmatpush1.msra.mxu0 %v126
    %590 = vmatprep.subr.mxu0 0.0
    %591 = vmatpush1.msra.mxu0 %v127
    %592 = vmatprep.subr.mxu0 0.0
    %593 = vmatpush1.msra.mxu0 %v128
    %594 = vmatprep.subr.mxu0 0.0
    %595 = vmatpush1.msra.mxu0 %v129
    %596 = vmatprep.subr.mxu0 0.0
    %597 = vmatpush1.msra.mxu0 %v130
    %598 = vmatprep.subr.mxu0 0.0
    %599 = vmatpush1.msra.mxu0 %v131
    %600 = vmatprep.subr.mxu0 0.0
    %601 = vmatpush1.msra.mxu0 %v132
    %602 = vmatprep.subr.mxu0 0.0
    %603 = vmatpush1.msra.mxu0 %v133
    %604 = vmatprep.subr.mxu0 0.0
    %605 = vmatpush1.msra.mxu0 %v134
    %606 = vmatprep.subr.mxu0 0.0
    %607 = vmatpush1.msra.mxu0 %v135
    %608 = vmatprep.subr.mxu0 0.0
    %609 = vmatpush1.msra.mxu0 %v136
    %610 = vmatprep.subr.mxu0 0.0
    %611 = vmatpush1.msra.mxu0 %v137
    %612 = vmatprep.subr.mxu0 0.0
    %613 = vmatpush1.msra.mxu0 %v138
    %614 = vmatprep.subr.mxu0 0.0
    %615 = vmatpush1.msra.mxu0 %v139
    %616 = vmatprep.subr.mxu0 0.0
    %617 = vmatpush1.msra.mxu0 %v140
    %618 = vmatprep.mubr.f32.mxu0 %v55
    %619 = vmatmul.mubr.f32.gmra.mrb[0].mxu0 %v54
    %v620 = vpop.f32.mrb[0].mxu0
    %v621 = vadd.f32 %v551, %v620
    %v622 = vpop.f32.mrb[0].mxu0
    %623 = vdwg.mxu0
    %624 = vmatprep.subr.mxu0 0.0
    %625 = vmatpush1.msra.mxu0 %v141
    %626 = vmatprep.subr.mxu0 0.0
    %627 = vmatpush1.msra.mxu0 %v142
    %628 = vmatprep.subr.mxu0 0.0
    %629 = vmatpush1.msra.mxu0 %v143
    %630 = vmatprep.subr.mxu0 0.0
    %631 = vmatpush1.msra.mxu0 %v144
    %632 = vmatprep.subr.mxu0 0.0
    %633 = vmatpush1.msra.mxu0 %v145
    %634 = vmatprep.subr.mxu0 0.0
    %635 = vmatpush1.msra.mxu0 %v146
    %636 = vmatprep.subr.mxu0 0.0
    %637 = vmatpush1.msra.mxu0 %v147
    %638 = vmatprep.subr.mxu0 0.0
    %639 = vmatpush1.msra.mxu0 %v148
    %640 = vmatprep.subr.mxu0 0.0
    %641 = vmatpush1.msra.mxu0 %v149
    %642 = vmatprep.subr.mxu0 0.0
    %643 = vmatpush1.msra.mxu0 %v150
    %644 = vmatprep.subr.mxu0 0.0
    %645 = vmatpush1.msra.mxu0 %v151
    %646 = vmatprep.subr.mxu0 0.0
    %647 = vmatpush1.msra.mxu0 %v152
    %648 = vmatprep.subr.mxu0 0.0
    %649 = vmatpush1.msra.mxu0 %v153
    %650 = vmatprep.subr.mxu0 0.0
    %651 = vmatpush1.msra.mxu0 %v154
    %652 = vmatprep.subr.mxu0 0.0
    %653 = vmatpush1.msra.mxu0 %v155
    %654 = vmatprep.subr.mxu0 0.0
    %655 = vmatpush1.msra.mxu0 %v156
    %656 = vmatprep.subr.mxu0 0.0
    %657 = vmatpush1.msra.mxu0 %v157
    %658 = vmatprep.subr.mxu0 0.0
    %659 = vmatpush1.msra.mxu0 %v158
    %660 = vmatprep.subr.mxu0 0.0
    %661 = vmatpush1.msra.mxu0 %v159
    %662 = vmatprep.subr.mxu0 0.0
    %663 = vmatpush1.msra.mxu0 %v160
    %664 = vmatprep.subr.mxu0 0.0
    %665 = vmatpush1.msra.mxu0 %v161
    %666 = vmatprep.subr.mxu0 0.0
    %667 = vmatpush1.msra.mxu0 %v162
    %668 = vmatprep.subr.mxu0 0.0
    %669 = vmatpush1.msra.mxu0 %v163
    %670 = vmatprep.subr.mxu0 0.0
    %671 = vmatpush1.msra.mxu0 %v164
    %672 = vmatprep.subr.mxu0 0.0
    %673 = vmatpush1.msra.mxu0 %v165
    %674 = vmatprep.subr.mxu0 0.0
    %675 = vmatpush1.msra.mxu0 %v166
    %676 = vmatprep.subr.mxu0 0.0
    %677 = vmatpush1.msra.mxu0 %v167
    %678 = vmatprep.subr.mxu0 0.0
    %679 = vmatpush1.msra.mxu0 %v168
    %680 = vmatprep.subr.mxu0 0.0
    %681 = vmatpush1.msra.mxu0 %v169
    %682 = vmatprep.subr.mxu0 0.0
    %683 = vmatpush1.msra.mxu0 %v170
    %684 = vmatprep.subr.mxu0 0.0
    %685 = vmatpush1.msra.mxu0 %v171
    %686 = vmatprep.subr.mxu0 0.0
    %687 = vmatpush1.msra.mxu0 %v172
    %688 = vmatprep.mubr.f32.mxu0 %v57
    %689 = vmatmul.mubr.f32.gmra.mrb[0].mxu0 %v56
    %v690 = vpop.f32.mrb[0].mxu0
    %v691 = vadd.f32 %v621, %v690
    %v692 = vpop.f32.mrb[0].mxu0
    %693 = vdwg.mxu0
    %694 = vmatprep.subr.mxu0 0.0
    %695 = vmatpush1.msra.mxu0 %v173
    %696 = vmatprep.subr.mxu0 0.0
    %697 = vmatpush1.msra.mxu0 %v174
    %698 = vmatprep.subr.mxu0 0.0
    %699 = vmatpush1.msra.mxu0 %v175
    %700 = vmatprep.subr.mxu0 0.0
    %701 = vmatpush1.msra.mxu0 %v176
    %702 = vmatprep.subr.mxu0 0.0
    %703 = vmatpush1.msra.mxu0 %v177
    %704 = vmatprep.subr.mxu0 0.0
    %705 = vmatpush1.msra.mxu0 %v178
    %706 = vmatprep.subr.mxu0 0.0
    %707 = vmatpush1.msra.mxu0 %v179
    %708 = vmatprep.subr.mxu0 0.0
    %709 = vmatpush1.msra.mxu0 %v180
    %710 = vmatprep.subr.mxu0 0.0
    %711 = vmatpush1.msra.mxu0 %v181
    %712 = vmatprep.subr.mxu0 0.0
    %713 = vmatpush1.msra.mxu0 %v182
    %714 = vmatprep.subr.mxu0 0.0
    %715 = vmatpush1.msra.mxu0 %v183
    %716 = vmatprep.subr.mxu0 0.0
    %717 = vmatpush1.msra.mxu0 %v184
    %718 = vmatprep.subr.mxu0 0.0
    %719 = vmatpush1.msra.mxu0 %v185
    %720 = vmatprep.subr.mxu0 0.0
    %721 = vmatpush1.msra.mxu0 %v186
    %722 = vmatprep.subr.mxu0 0.0
    %723 = vmatpush1.msra.mxu0 %v187
    %724 = vmatprep.subr.mxu0 0.0
    %725 = vmatpush1.msra.mxu0 %v188
    %726 = vmatprep.subr.mxu0 0.0
    %727 = vmatpush1.msra.mxu0 %v189
    %728 = vmatprep.subr.mxu0 0.0
    %729 = vmatpush1.msra.mxu0 %v190
    %730 = vmatprep.subr.mxu0 0.0
    %731 = vmatpush1.msra.mxu0 %v191
    %732 = vmatprep.subr.mxu0 0.0
    %733 = vmatpush1.msra.mxu0 %v192
    %734 = vmatprep.subr.mxu0 0.0
    %735 = vmatpush1.msra.mxu0 %v193
    %736 = vmatprep.subr.mxu0 0.0
    %737 = vmatpush1.msra.mxu0 %v194
    %738 = vmatprep.subr.mxu0 0.0
    %739 = vmatpush1.msra.mxu0 %v195
    %740 = vmatprep.subr.mxu0 0.0
    %741 = vmatpush1.msra.mxu0 %v196
    %742 = vmatprep.subr.mxu0 0.0
    %743 = vmatpush1.msra.mxu0 %v197
    %744 = vmatprep.subr.mxu0 0.0
    %745 = vmatpush1.msra.mxu0 %v198
    %746 = vmatprep.subr.mxu0 0.0
    %747 = vmatpush1.msra.mxu0 %v199
    %748 = vmatprep.subr.mxu0 0.0
    %749 = vmatpush1.msra.mxu0 %v200
    %750 = vmatprep.subr.mxu0 0.0
    %751 = vmatpush1.msra.mxu0 %v201
    %752 = vmatprep.subr.mxu0 0.0
    %753 = vmatpush1.msra.mxu0 %v202
    %754 = vmatprep.subr.mxu0 0.0
    %755 = vmatpush1.msra.mxu0 %v203
    %756 = vmatprep.subr.mxu0 0.0
    %757 = vmatpush1.msra.mxu0 %v204
    %758 = vmatprep.mubr.f32.mxu0 %v59
    %759 = vmatmul.mubr.f32.gmra.mrb[0].mxu0 %v58
    %v760 = vpop.f32.mrb[0].mxu0
    %v761 = vadd.f32 %v691, %v760
    %v762 = vpop.f32.mrb[0].mxu0
    %763 = vdwg.mxu0
    %764 = vmatprep.subr.mxu0 0.0
    %765 = vmatpush1.msra.mxu0 %v205
    %766 = vmatprep.subr.mxu0 0.0
    %767 = vmatpush1.msra.mxu0 %v206
    %768 = vmatprep.subr.mxu0 0.0
    %769 = vmatpush1.msra.mxu0 %v207
    %770 = vmatprep.subr.mxu0 0.0
    %771 = vmatpush1.msra.mxu0 %v208
    %772 = vmatprep.subr.mxu0 0.0
    %773 = vmatpush1.msra.mxu0 %v209
    %774 = vmatprep.subr.mxu0 0.0
    %775 = vmatpush1.msra.mxu0 %v210
    %776 = vmatprep.subr.mxu0 0.0
    %777 = vmatpush1.msra.mxu0 %v211
    %778 = vmatprep.subr.mxu0 0.0
    %779 = vmatpush1.msra.mxu0 %v212
    %780 = vmatprep.subr.mxu0 0.0
    %781 = vmatpush1.msra.mxu0 %v213
    %782 = vmatprep.subr.mxu0 0.0
    %783 = vmatpush1.msra.mxu0 %v214
    %784 = vmatprep.subr.mxu0 0.0
    %785 = vmatpush1.msra.mxu0 %v215
    %786 = vmatprep.subr.mxu0 0.0
    %787 = vmatpush1.msra.mxu0 %v216
    %788 = vmatprep.subr.mxu0 0.0
    %789 = vmatpush1.msra.mxu0 %v217
    %790 = vmatprep.subr.mxu0 0.0
    %791 = vmatpush1.msra.mxu0 %v218
    %792 = vmatprep.subr.mxu0 0.0
    %793 = vmatpush1.msra.mxu0 %v219
    %794 = vmatprep.subr.mxu0 0.0
    %795 = vmatpush1.msra.mxu0 %v220
    %796 = vmatprep.subr.mxu0 0.0
    %797 = vmatpush1.msra.mxu0 %v221
    %798 = vmatprep.subr.mxu0 0.0
    %799 = vmatpush1.msra.mxu0 %v222
    %800 = vmatprep.subr.mxu0 0.0
    %801 = vmatpush1.msra.mxu0 %v223
    %802 = vmatprep.subr.mxu0 0.0
    %803 = vmatpush1.msra.mxu0 %v224
    %804 = vmatprep.subr.mxu0 0.0
    %805 = vmatpush1.msra.mxu0 %v225
    %806 = vmatprep.subr.mxu0 0.0
    %807 = vmatpush1.msra.mxu0 %v226
    %808 = vmatprep.subr.mxu0 0.0
    %809 = vmatpush1.msra.mxu0 %v227
    %810 = vmatprep.subr.mxu0 0.0
    %811 = vmatpush1.msra.mxu0 %v228
    %812 = vmatprep.subr.mxu0 0.0
    %813 = vmatpush1.msra.mxu0 %v229
    %814 = vmatprep.subr.mxu0 0.0
    %815 = vmatpush1.msra.mxu0 %v230
    %816 = vmatprep.subr.mxu0 0.0
    %817 = vmatpush1.msra.mxu0 %v231
    %818 = vmatprep.subr.mxu0 0.0
    %819 = vmatpush1.msra.mxu0 %v232
    %820 = vmatprep.subr.mxu0 0.0
    %821 = vmatpush1.msra.mxu0 %v233
    %822 = vmatprep.subr.mxu0 0.0
    %823 = vmatpush1.msra.mxu0 %v234
    %824 = vmatprep.subr.mxu0 0.0
    %825 = vmatpush1.msra.mxu0 %v235
    %826 = vmatprep.subr.mxu0 0.0
    %827 = vmatpush1.msra.mxu0 %v236
    %828 = vmatprep.mubr.f32.mxu0 %v61
    %829 = vmatmul.mubr.f32.gmra.mrb[0].mxu0 %v60
    %v830 = vpop.f32.mrb[0].mxu0
    %v831 = vadd.f32 %v761, %v830
    %v832 = vpop.f32.mrb[0].mxu0
    %833 = vdwg.mxu0
    %834 = vmatprep.subr.mxu0 0.0
    %835 = vmatpush1.msra.mxu0 %v237
    %836 = vmatprep.subr.mxu0 0.0
    %837 = vmatpush1.msra.mxu0 %v238
    %838 = vmatprep.subr.mxu0 0.0
    %839 = vmatpush1.msra.mxu0 %v239
    %840 = vmatprep.subr.mxu0 0.0
    %841 = vmatpush1.msra.mxu0 %v240
    %842 = vmatprep.subr.mxu0 0.0
    %843 = vmatpush1.msra.mxu0 %v241
    %844 = vmatprep.subr.mxu0 0.0
    %845 = vmatpush1.msra.mxu0 %v242
    %846 = vmatprep.subr.mxu0 0.0
    %847 = vmatpush1.msra.mxu0 %v243
    %848 = vmatprep.subr.mxu0 0.0
    %849 = vmatpush1.msra.mxu0 %v244
    %850 = vmatprep.subr.mxu0 0.0
    %851 = vmatpush1.msra.mxu0 %v245
    %852 = vmatprep.subr.mxu0 0.0
    %853 = vmatpush1.msra.mxu0 %v246
    %854 = vmatprep.subr.mxu0 0.0
    %855 = vmatpush1.msra.mxu0 %v247
    %856 = vmatprep.subr.mxu0 0.0
    %857 = vmatpush1.msra.mxu0 %v248
    %858 = vmatprep.subr.mxu0 0.0
    %859 = vmatpush1.msra.mxu0 %v249
    %860 = vmatprep.subr.mxu0 0.0
    %861 = vmatpush1.msra.mxu0 %v250
    %862 = vmatprep.subr.mxu0 0.0
    %863 = vmatpush1.msra.mxu0 %v251
    %864 = vmatprep.subr.mxu0 0.0
    %865 = vmatpush1.msra.mxu0 %v252
    %866 = vmatprep.subr.mxu0 0.0
    %867 = vmatpush1.msra.mxu0 %v253
    %868 = vmatprep.subr.mxu0 0.0
    %869 = vmatpush1.msra.mxu0 %v254
    %870 = vmatprep.subr.mxu0 0.0
    %871 = vmatpush1.msra.mxu0 %v255
    %872 = vmatprep.subr.mxu0 0.0
    %873 = vmatpush1.msra.mxu0 %v256
    %874 = vmatprep.subr.mxu0 0.0
    %875 = vmatpush1.msra.mxu0 %v257
    %876 = vmatprep.subr.mxu0 0.0
    %877 = vmatpush1.msra.mxu0 %v258
    %878 = vmatprep.subr.mxu0 0.0
    %879 = vmatpush1.msra.mxu0 %v259
    %880 = vmatprep.subr.mxu0 0.0
    %881 = vmatpush1.msra.mxu0 %v260
    %882 = vmatprep.subr.mxu0 0.0
    %883 = vmatpush1.msra.mxu0 %v261
    %884 = vmatprep.subr.mxu0 0.0
    %885 = vmatpush1.msra.mxu0 %v262
    %886 = vmatprep.subr.mxu0 0.0
    %887 = vmatpush1.msra.mxu0 %v263
    %888 = vmatprep.subr.mxu0 0.0
    %889 = vmatpush1.msra.mxu0 %v264
    %890 = vmatprep.subr.mxu0 0.0
    %891 = vmatpush1.msra.mxu0 %v265
    %892 = vmatprep.subr.mxu0 0.0
    %893 = vmatpush1.msra.mxu0 %v266
    %894 = vmatprep.subr.mxu0 0.0
    %895 = vmatpush1.msra.mxu0 %v267
    %896 = vmatprep.subr.mxu0 0.0
    %897 = vmatpush1.msra.mxu0 %v268
    %898 = vmatprep.mubr.f32.mxu0 %v63
    %899 = vmatmul.mubr.f32.gmra.mrb[0].mxu0 %v62
    %v900 = vpop.f32.mrb[0].mxu0
    %v901 = vadd.f32 %v831, %v900
    %v902 = vpop.f32.mrb[0].mxu0
    %903 = vdwg.mxu0
    %904 = vmatprep.subr.mxu0 0.0
    %905 = vmatpush1.msra.mxu0 %v269
    %906 = vmatprep.subr.mxu0 0.0
    %907 = vmatpush1.msra.mxu0 %v270
    %908 = vmatprep.subr.mxu0 0.0
    %909 = vmatpush1.msra.mxu0 %v271
    %910 = vmatprep.subr.mxu0 0.0
    %911 = vmatpush1.msra.mxu0 %v272
    %912 = vmatprep.subr.mxu0 0.0
    %913 = vmatpush1.msra.mxu0 %v273
    %914 = vmatprep.subr.mxu0 0.0
    %915 = vmatpush1.msra.mxu0 %v274
    %916 = vmatprep.subr.mxu0 0.0
    %917 = vmatpush1.msra.mxu0 %v275
    %918 = vmatprep.subr.mxu0 0.0
    %919 = vmatpush1.msra.mxu0 %v276
    %920 = vmatprep.subr.mxu0 0.0
    %921 = vmatpush1.msra.mxu0 %v277
    %922 = vmatprep.subr.mxu0 0.0
    %923 = vmatpush1.msra.mxu0 %v278
    %924 = vmatprep.subr.mxu0 0.0
    %925 = vmatpush1.msra.mxu0 %v279
    %926 = vmatprep.subr.mxu0 0.0
    %927 = vmatpush1.msra.mxu0 %v280
    %928 = vmatprep.subr.mxu0 0.0
    %929 = vmatpush1.msra.mxu0 %v281
    %930 = vmatprep.subr.mxu0 0.0
    %931 = vmatpush1.msra.mxu0 %v282
    %932 = vmatprep.subr.mxu0 0.0
    %933 = vmatpush1.msra.mxu0 %v283
    %934 = vmatprep.subr.mxu0 0.0
    %935 = vmatpush1.msra.mxu0 %v284
    %936 = vmatprep.subr.mxu0 0.0
    %937 = vmatpush1.msra.mxu0 %v285
    %938 = vmatprep.subr.mxu0 0.0
    %939 = vmatpush1.msra.mxu0 %v286
    %940 = vmatprep.subr.mxu0 0.0
    %941 = vmatpush1.msra.mxu0 %v287
    %942 = vmatprep.subr.mxu0 0.0
    %943 = vmatpush1.msra.mxu0 %v288
    %944 = vmatprep.subr.mxu0 0.0
    %945 = vmatpush1.msra.mxu0 %v289
    %946 = vmatprep.subr.mxu0 0.0
    %947 = vmatpush1.msra.mxu0 %v290
    %948 = vmatprep.subr.mxu0 0.0
    %949 = vmatpush1.msra.mxu0 %v291
    %950 = vmatprep.subr.mxu0 0.0
    %951 = vmatpush1.msra.mxu0 %v292
    %952 = vmatprep.subr.mxu0 0.0
    %953 = vmatpush1.msra.mxu0 %v293
    %954 = vmatprep.subr.mxu0 0.0
    %955 = vmatpush1.msra.mxu0 %v294
    %956 = vmatprep.subr.mxu0 0.0
    %957 = vmatpush1.msra.mxu0 %v295
    %958 = vmatprep.subr.mxu0 0.0
    %959 = vmatpush1.msra.mxu0 %v296
    %960 = vmatprep.subr.mxu0 0.0
    %961 = vmatpush1.msra.mxu0 %v297
    %962 = vmatprep.subr.mxu0 0.0
    %963 = vmatpush1.msra.mxu0 %v298
    %964 = vmatprep.subr.mxu0 0.0
    %965 = vmatpush1.msra.mxu0 %v299
    %966 = vmatprep.subr.mxu0 0.0
    %967 = vmatpush1.msra.mxu0 %v300
    %968 = vmatprep.mubr.f32.mxu0 %v65
    %969 = vmatmul.mubr.f32.gmra.mrb[0].mxu0 %v64
    %v970 = vpop.f32.mrb[0].mxu0
    %v971 = vadd.f32 %v901, %v970
    %v972 = vpop.f32.mrb[0].mxu0
    %973 = vdwg.mxu0
    %974 = vmatprep.subr.mxu0 0.0
    %975 = vmatpush1.msra.mxu0 %v301
    %976 = vmatprep.subr.mxu0 0.0
    %977 = vmatpush1.msra.mxu0 %v302
    %978 = vmatprep.subr.mxu0 0.0
    %979 = vmatpush1.msra.mxu0 %v303
    %980 = vmatprep.subr.mxu0 0.0
    %981 = vmatpush1.msra.mxu0 %v304
    %982 = vmatprep.subr.mxu0 0.0
    %983 = vmatpush1.msra.mxu0 %v305
    %984 = vmatprep.subr.mxu0 0.0
    %985 = vmatpush1.msra.mxu0 %v306
    %986 = vmatprep.subr.mxu0 0.0
    %987 = vmatpush1.msra.mxu0 %v307
    %988 = vmatprep.subr.mxu0 0.0
    %989 = vmatpush1.msra.mxu0 %v308
    %990 = vmatprep.subr.mxu0 0.0
    %991 = vmatpush1.msra.mxu0 %v309
    %992 = vmatprep.subr.mxu0 0.0
    %993 = vmatpush1.msra.mxu0 %v310
    %994 = vmatprep.subr.mxu0 0.0
    %995 = vmatpush1.msra.mxu0 %v311
    %996 = vmatprep.subr.mxu0 0.0
    %997 = vmatpush1.msra.mxu0 %v312
    %998 = vmatprep.subr.mxu0 0.0
    %999 = vmatpush1.msra.mxu0 %v313
    %1000 = vmatprep.subr.mxu0 0.0
    %1001 = vmatpush1.msra.mxu0 %v314
    %1002 = vmatprep.subr.mxu0 0.0
    %1003 = vmatpush1.msra.mxu0 %v315
    %1004 = vmatprep.subr.mxu0 0.0
    %1005 = vmatpush1.msra.mxu0 %v316
    %1006 = vmatprep.subr.mxu0 0.0
    %1007 = vmatpush1.msra.mxu0 %v317
    %1008 = vmatprep.subr.mxu0 0.0
    %1009 = vmatpush1.msra.mxu0 %v318
    %1010 = vmatprep.subr.mxu0 0.0
    %1011 = vmatpush1.msra.mxu0 %v319
    %1012 = vmatprep.subr.mxu0 0.0
    %1013 = vmatpush1.msra.mxu0 %v320
    %1014 = vmatprep.subr.mxu0 0.0
    %1015 = vmatpush1.msra.mxu0 %v321
    %1016 = vmatprep.subr.mxu0 0.0
    %1017 = vmatpush1.msra.mxu0 %v322
    %1018 = vmatprep.subr.mxu0 0.0
    %1019 = vmatpush1.msra.mxu0 %v323
    %1020 = vmatprep.subr.mxu0 0.0
    %1021 = vmatpush1.msra.mxu0 %v324
    %1022 = vmatprep.subr.mxu0 0.0
    %1023 = vmatpush1.msra.mxu0 %v325
    %1024 = vmatprep.subr.mxu0 0.0
    %1025 = vmatpush1.msra.mxu0 %v326
    %1026 = vmatprep.subr.mxu0 0.0
    %1027 = vmatpush1.msra.mxu0 %v327
    %1028 = vmatprep.subr.mxu0 0.0
    %1029 = vmatpush1.msra.mxu0 %v328
    %1030 = vmatprep.subr.mxu0 0.0
    %1031 = vmatpush1.msra.mxu0 %v329
    %1032 = vmatprep.subr.mxu0 0.0
    %1033 = vmatpush1.msra.mxu0 %v330
    %1034 = vmatprep.subr.mxu0 0.0
    %1035 = vmatpush1.msra.mxu0 %v331
    %1036 = vmatprep.subr.mxu0 0.0
    %1037 = vmatpush1.msra.mxu0 %v332
    %1038 = vmatprep.mubr.f32.mxu0 %v67
    %1039 = vmatmul.mubr.f32.gmra.mrb[0].mxu0 %v66
    %v1040 = vpop.f32.mrb[0].mxu0
    %v1041 = vadd.f32 %v971, %v1040
    %v1042 = vpop.f32.mrb[0].mxu0
    %1043 = vdwg.mxu0
    %1044 = vmatprep.subr.mxu0 0.0
    %1045 = vmatpush1.msra.mxu0 %v333
    %1046 = vmatprep.subr.mxu0 0.0
    %1047 = vmatpush1.msra.mxu0 %v334
    %1048 = vmatprep.subr.mxu0 0.0
    %1049 = vmatpush1.msra.mxu0 %v335
    %1050 = vmatprep.subr.mxu0 0.0
    %1051 = vmatpush1.msra.mxu0 %v336
    %1052 = vmatprep.subr.mxu0 0.0
    %1053 = vmatpush1.msra.mxu0 %v337
    %1054 = vmatprep.subr.mxu0 0.0
    %1055 = vmatpush1.msra.mxu0 %v338
    %1056 = vmatprep.subr.mxu0 0.0
    %1057 = vmatpush1.msra.mxu0 %v339
    %1058 = vmatprep.subr.mxu0 0.0
    %1059 = vmatpush1.msra.mxu0 %v340
    %1060 = vmatprep.subr.mxu0 0.0
    %1061 = vmatpush1.msra.mxu0 %v341
    %1062 = vmatprep.subr.mxu0 0.0
    %1063 = vmatpush1.msra.mxu0 %v342
    %1064 = vmatprep.subr.mxu0 0.0
    %1065 = vmatpush1.msra.mxu0 %v343
    %1066 = vmatprep.subr.mxu0 0.0
    %1067 = vmatpush1.msra.mxu0 %v344
    %1068 = vmatprep.subr.mxu0 0.0
    %1069 = vmatpush1.msra.mxu0 %v345
    %1070 = vmatprep.subr.mxu0 0.0
    %1071 = vmatpush1.msra.mxu0 %v346
    %1072 = vmatprep.subr.mxu0 0.0
    %1073 = vmatpush1.msra.mxu0 %v347
    %1074 = vmatprep.subr.mxu0 0.0
    %1075 = vmatpush1.msra.mxu0 %v348
    %1076 = vmatprep.subr.mxu0 0.0
    %1077 = vmatpush1.msra.mxu0 %v349
    %1078 = vmatprep.subr.mxu0 0.0
    %1079 = vmatpush1.msra.mxu0 %v350
    %1080 = vmatprep.subr.mxu0 0.0
    %1081 = vmatpush1.msra.mxu0 %v351
    %1082 = vmatprep.subr.mxu0 0.0
    %1083 = vmatpush1.msra.mxu0 %v352
    %1084 = vmatprep.subr.mxu0 0.0
    %1085 = vmatpush1.msra.mxu0 %v353
    %1086 = vmatprep.subr.mxu0 0.0
    %1087 = vmatpush1.msra.mxu0 %v354
    %1088 = vmatprep.subr.mxu0 0.0
    %1089 = vmatpush1.msra.mxu0 %v355
    %1090 = vmatprep.subr.mxu0 0.0
    %1091 = vmatpush1.msra.mxu0 %v356
    %1092 = vmatprep.subr.mxu0 0.0
    %1093 = vmatpush1.msra.mxu0 %v357
    %1094 = vmatprep.subr.mxu0 0.0
    %1095 = vmatpush1.msra.mxu0 %v358
    %1096 = vmatprep.subr.mxu0 0.0
    %1097 = vmatpush1.msra.mxu0 %v359
    %1098 = vmatprep.subr.mxu0 0.0
    %1099 = vmatpush1.msra.mxu0 %v360
    %1100 = vmatprep.subr.mxu0 0.0
    %1101 = vmatpush1.msra.mxu0 %v361
    %1102 = vmatprep.subr.mxu0 0.0
    %1103 = vmatpush1.msra.mxu0 %v362
    %1104 = vmatprep.subr.mxu0 0.0
    %1105 = vmatpush1.msra.mxu0 %v363
    %1106 = vmatprep.subr.mxu0 0.0
    %1107 = vmatpush1.msra.mxu0 %v364
    %1108 = vmatprep.mubr.f32.mxu0 %v69
    %1109 = vmatmul.mubr.f32.gmra.mrb[0].mxu0 %v68
    %v1110 = vpop.f32.mrb[0].mxu0
    %v1111 = vadd.f32 %v1041, %v1110
    %v1112 = vpop.f32.mrb[0].mxu0
    %1113 = vdwg.mxu0
    %1114 = vmatprep.subr.mxu0 0.0
    %1115 = vmatpush1.msra.mxu0 %v365
    %1116 = vmatprep.subr.mxu0 0.0
    %1117 = vmatpush1.msra.mxu0 %v366
    %1118 = vmatprep.subr.mxu0 0.0
    %1119 = vmatpush1.msra.mxu0 %v367
    %1120 = vmatprep.subr.mxu0 0.0
    %1121 = vmatpush1.msra.mxu0 %v368
    %1122 = vmatprep.subr.mxu0 0.0
    %1123 = vmatpush1.msra.mxu0 %v369
    %1124 = vmatprep.subr.mxu0 0.0
    %1125 = vmatpush1.msra.mxu0 %v370
    %1126 = vmatprep.subr.mxu0 0.0
    %1127 = vmatpush1.msra.mxu0 %v371
    %1128 = vmatprep.subr.mxu0 0.0
    %1129 = vmatpush1.msra.mxu0 %v372
    %1130 = vmatprep.subr.mxu0 0.0
    %1131 = vmatpush1.msra.mxu0 %v373
    %1132 = vmatprep.subr.mxu0 0.0
    %1133 = vmatpush1.msra.mxu0 %v374
    %1134 = vmatprep.subr.mxu0 0.0
    %1135 = vmatpush1.msra.mxu0 %v375
    %1136 = vmatprep.subr.mxu0 0.0
    %1137 = vmatpush1.msra.mxu0 %v376
    %1138 = vmatprep.subr.mxu0 0.0
    %1139 = vmatpush1.msra.mxu0 %v377
    %1140 = vmatprep.subr.mxu0 0.0
    %1141 = vmatpush1.msra.mxu0 %v378
    %1142 = vmatprep.subr.mxu0 0.0
    %1143 = vmatpush1.msra.mxu0 %v379
    %1144 = vmatprep.subr.mxu0 0.0
    %1145 = vmatpush1.msra.mxu0 %v380
    %1146 = vmatprep.subr.mxu0 0.0
    %1147 = vmatpush1.msra.mxu0 %v381
    %1148 = vmatprep.subr.mxu0 0.0
    %1149 = vmatpush1.msra.mxu0 %v382
    %1150 = vmatprep.subr.mxu0 0.0
    %1151 = vmatpush1.msra.mxu0 %v383
    %1152 = vmatprep.subr.mxu0 0.0
    %1153 = vmatpush1.msra.mxu0 %v384
    %1154 = vmatprep.subr.mxu0 0.0
    %1155 = vmatpush1.msra.mxu0 %v385
    %1156 = vmatprep.subr.mxu0 0.0
    %1157 = vmatpush1.msra.mxu0 %v386
    %1158 = vmatprep.subr.mxu0 0.0
    %1159 = vmatpush1.msra.mxu0 %v387
    %1160 = vmatprep.subr.mxu0 0.0
    %1161 = vmatpush1.msra.mxu0 %v388
    %1162 = vmatprep.subr.mxu0 0.0
    %1163 = vmatpush1.msra.mxu0 %v389
    %1164 = vmatprep.subr.mxu0 0.0
    %1165 = vmatpush1.msra.mxu0 %v390
    %1166 = vmatprep.subr.mxu0 0.0
    %1167 = vmatpush1.msra.mxu0 %v391
    %1168 = vmatprep.subr.mxu0 0.0
    %1169 = vmatpush1.msra.mxu0 %v392
    %1170 = vmatprep.subr.mxu0 0.0
    %1171 = vmatpush1.msra.mxu0 %v393
    %1172 = vmatprep.subr.mxu0 0.0
    %1173 = vmatpush1.msra.mxu0 %v394
    %1174 = vmatprep.subr.mxu0 0.0
    %1175 = vmatpush1.msra.mxu0 %v395
    %1176 = vmatprep.subr.mxu0 0.0
    %1177 = vmatpush1.msra.mxu0 %v396
    %1178 = vmatprep.mubr.f32.mxu0 %v71
    %1179 = vmatmul.mubr.f32.gmra.mrb[0].mxu0 %v70
    %v1180 = vpop.f32.mrb[0].mxu0
    %v1181 = vadd.f32 %v1111, %v1180
    %v1182 = vpop.f32.mrb[0].mxu0
    %1183 = vdwg.mxu0
    %1184 = vmatprep.subr.mxu0 0.0
    %1185 = vmatpush1.msra.mxu0 %v397
    %1186 = vmatprep.subr.mxu0 0.0
    %1187 = vmatpush1.msra.mxu0 %v398
    %1188 = vmatprep.subr.mxu0 0.0
    %1189 = vmatpush1.msra.mxu0 %v399
    %1190 = vmatprep.subr.mxu0 0.0
    %1191 = vmatpush1.msra.mxu0 %v400
    %1192 = vmatprep.subr.mxu0 0.0
    %1193 = vmatpush1.msra.mxu0 %v401
    %1194 = vmatprep.subr.mxu0 0.0
    %1195 = vmatpush1.msra.mxu0 %v402
    %1196 = vmatprep.subr.mxu0 0.0
    %1197 = vmatpush1.msra.mxu0 %v403
    %1198 = vmatprep.subr.mxu0 0.0
    %1199 = vmatpush1.msra.mxu0 %v404
    %1200 = vmatprep.subr.mxu0 0.0
    %1201 = vmatpush1.msra.mxu0 %v405
    %1202 = vmatprep.subr.mxu0 0.0
    %1203 = vmatpush1.msra.mxu0 %v406
    %1204 = vmatprep.subr.mxu0 0.0
    %1205 = vmatpush1.msra.mxu0 %v407
    %1206 = vmatprep.subr.mxu0 0.0
    %1207 = vmatpush1.msra.mxu0 %v408
    %1208 = vmatprep.subr.mxu0 0.0
    %1209 = vmatpush1.msra.mxu0 %v409
    %1210 = vmatprep.subr.mxu0 0.0
    %1211 = vmatpush1.msra.mxu0 %v410
    %1212 = vmatprep.subr.mxu0 0.0
    %1213 = vmatpush1.msra.mxu0 %v411
    %1214 = vmatprep.subr.mxu0 0.0
    %1215 = vmatpush1.msra.mxu0 %v412
    %1216 = vmatprep.subr.mxu0 0.0
    %1217 = vmatpush1.msra.mxu0 %v413
    %1218 = vmatprep.subr.mxu0 0.0
    %1219 = vmatpush1.msra.mxu0 %v414
    %1220 = vmatprep.subr.mxu0 0.0
    %1221 = vmatpush1.msra.mxu0 %v415
    %1222 = vmatprep.subr.mxu0 0.0
    %1223 = vmatpush1.msra.mxu0 %v416
    %1224 = vmatprep.subr.mxu0 0.0
    %1225 = vmatpush1.msra.mxu0 %v417
    %1226 = vmatprep.subr.mxu0 0.0
    %1227 = vmatpush1.msra.mxu0 %v418
    %1228 = vmatprep.subr.mxu0 0.0
    %1229 = vmatpush1.msra.mxu0 %v419
    %1230 = vmatprep.subr.mxu0 0.0
    %1231 = vmatpush1.msra.mxu0 %v420
    %1232 = vmatprep.subr.mxu0 0.0
    %1233 = vmatpush1.msra.mxu0 %v421
    %1234 = vmatprep.subr.mxu0 0.0
    %1235 = vmatpush1.msra.mxu0 %v422
    %1236 = vmatprep.subr.mxu0 0.0
    %1237 = vmatpush1.msra.mxu0 %v423
    %1238 = vmatprep.subr.mxu0 0.0
    %1239 = vmatpush1.msra.mxu0 %v424
    %1240 = vmatprep.subr.mxu0 0.0
    %1241 = vmatpush1.msra.mxu0 %v425
    %1242 = vmatprep.subr.mxu0 0.0
    %1243 = vmatpush1.msra.mxu0 %v426
    %1244 = vmatprep.subr.mxu0 0.0
    %1245 = vmatpush1.msra.mxu0 %v427
    %1246 = vmatprep.subr.mxu0 0.0
    %1247 = vmatpush1.msra.mxu0 %v428
    %1248 = vmatprep.mubr.f32.mxu0 %v73
    %1249 = vmatmul.mubr.f32.gmra.mrb[0].mxu0 %v72
    %v1250 = vpop.f32.mrb[0].mxu0
    %v1251 = vadd.f32 %v1181, %v1250
    %v1252 = vpop.f32.mrb[0].mxu0
    %1253 = vdwg.mxu0
    %1254 = vmatprep.subr.mxu0 0.0
    %1255 = vmatpush1.msra.mxu0 %v429
    %1256 = vmatprep.subr.mxu0 0.0
    %1257 = vmatpush1.msra.mxu0 %v430
    %1258 = vmatprep.subr.mxu0 0.0
    %1259 = vmatpush1.msra.mxu0 %v431
    %1260 = vmatprep.subr.mxu0 0.0
    %1261 = vmatpush1.msra.mxu0 %v432
    %1262 = vmatprep.subr.mxu0 0.0
    %1263 = vmatpush1.msra.mxu0 %v433
    %1264 = vmatprep.subr.mxu0 0.0
    %1265 = vmatpush1.msra.mxu0 %v434
    %1266 = vmatprep.subr.mxu0 0.0
    %1267 = vmatpush1.msra.mxu0 %v435
    %1268 = vmatprep.subr.mxu0 0.0
    %1269 = vmatpush1.msra.mxu0 %v436
    %1270 = vmatprep.subr.mxu0 0.0
    %1271 = vmatpush1.msra.mxu0 %v437
    %1272 = vmatprep.subr.mxu0 0.0
    %1273 = vmatpush1.msra.mxu0 %v438
    %1274 = vmatprep.subr.mxu0 0.0
    %1275 = vmatpush1.msra.mxu0 %v439
    %1276 = vmatprep.subr.mxu0 0.0
    %1277 = vmatpush1.msra.mxu0 %v440
    %1278 = vmatprep.subr.mxu0 0.0
    %1279 = vmatpush1.msra.mxu0 %v441
    %1280 = vmatprep.subr.mxu0 0.0
    %1281 = vmatpush1.msra.mxu0 %v442
    %1282 = vmatprep.subr.mxu0 0.0
    %1283 = vmatpush1.msra.mxu0 %v443
    %1284 = vmatprep.subr.mxu0 0.0
    %1285 = vmatpush1.msra.mxu0 %v444
    %1286 = vmatprep.subr.mxu0 0.0
    %1287 = vmatpush1.msra.mxu0 %v445
    %1288 = vmatprep.subr.mxu0 0.0
    %1289 = vmatpush1.msra.mxu0 %v446
    %1290 = vmatprep.subr.mxu0 0.0
    %1291 = vmatpush1.msra.mxu0 %v447
    %1292 = vmatprep.subr.mxu0 0.0
    %1293 = vmatpush1.msra.mxu0 %v448
    %1294 = vmatprep.subr.mxu0 0.0
    %1295 = vmatpush1.msra.mxu0 %v449
    %1296 = vmatprep.subr.mxu0 0.0
    %1297 = vmatpush1.msra.mxu0 %v450
    %1298 = vmatprep.subr.mxu0 0.0
    %1299 = vmatpush1.msra.mxu0 %v451
    %1300 = vmatprep.subr.mxu0 0.0
    %1301 = vmatpush1.msra.mxu0 %v452
    %1302 = vmatprep.subr.mxu0 0.0
    %1303 = vmatpush1.msra.mxu0 %v453
    %1304 = vmatprep.subr.mxu0 0.0
    %1305 = vmatpush1.msra.mxu0 %v454
    %1306 = vmatprep.subr.mxu0 0.0
    %1307 = vmatpush1.msra.mxu0 %v455
    %1308 = vmatprep.subr.mxu0 0.0
    %1309 = vmatpush1.msra.mxu0 %v456
    %1310 = vmatprep.subr.mxu0 0.0
    %1311 = vmatpush1.msra.mxu0 %v457
    %1312 = vmatprep.subr.mxu0 0.0
    %1313 = vmatpush1.msra.mxu0 %v458
    %1314 = vmatprep.subr.mxu0 0.0
    %1315 = vmatpush1.msra.mxu0 %v459
    %1316 = vmatprep.subr.mxu0 0.0
    %1317 = vmatpush1.msra.mxu0 %v460
    %1318 = vmatprep.mubr.f32.mxu0 %v75
    %1319 = vmatmul.mubr.f32.gmra.mrb[0].mxu0 %v74
    %v1320 = vpop.f32.mrb[0].mxu0
    %v1321 = vadd.f32 %v1251, %v1320
    %v1322 = vpop.f32.mrb[0].mxu0
    %1323 = vdwg.mxu0
    %1324 = vmatprep.subr.mxu0 0.0
    %1325 = vmatpush1.msra.mxu0 %v461
    %1326 = vmatprep.subr.mxu0 0.0
    %1327 = vmatpush1.msra.mxu0 %v462
    %1328 = vmatprep.subr.mxu0 0.0
    %1329 = vmatpush1.msra.mxu0 %v463
    %1330 = vmatprep.subr.mxu0 0.0
    %1331 = vmatpush1.msra.mxu0 %v464
    %1332 = vmatprep.subr.mxu0 0.0
    %1333 = vmatpush1.msra.mxu0 %v465
    %1334 = vmatprep.subr.mxu0 0.0
    %1335 = vmatpush1.msra.mxu0 %v466
    %1336 = vmatprep.subr.mxu0 0.0
    %1337 = vmatpush1.msra.mxu0 %v467
    %1338 = vmatprep.subr.mxu0 0.0
    %1339 = vmatpush1.msra.mxu0 %v468
    %1340 = vmatprep.subr.mxu0 0.0
    %1341 = vmatpush1.msra.mxu0 %v469
    %1342 = vmatprep.subr.mxu0 0.0
    %1343 = vmatpush1.msra.mxu0 %v470
    %1344 = vmatprep.subr.mxu0 0.0
    %1345 = vmatpush1.msra.mxu0 %v471
    %1346 = vmatprep.subr.mxu0 0.0
    %1347 = vmatpush1.msra.mxu0 %v472
    %1348 = vmatprep.subr.mxu0 0.0
    %1349 = vmatpush1.msra.mxu0 %v473
    %1350 = vmatprep.subr.mxu0 0.0
    %1351 = vmatpush1.msra.mxu0 %v474
    %1352 = vmatprep.subr.mxu0 0.0
    %1353 = vmatpush1.msra.mxu0 %v475
    %1354 = vmatprep.subr.mxu0 0.0
    %1355 = vmatpush1.msra.mxu0 %v476
    %1356 = vmatprep.subr.mxu0 0.0
    %1357 = vmatpush1.msra.mxu0 0.0
    %1358 = vmatprep.subr.mxu0 0.0
    %1359 = vmatpush1.msra.mxu0 0.0
    %1360 = vmatprep.subr.mxu0 0.0
    %1361 = vmatpush1.msra.mxu0 0.0
    %1362 = vmatprep.subr.mxu0 0.0
    %1363 = vmatpush1.msra.mxu0 0.0
    %1364 = vmatprep.subr.mxu0 0.0
    %1365 = vmatpush1.msra.mxu0 0.0
    %1366 = vmatprep.subr.mxu0 0.0
    %1367 = vmatpush1.msra.mxu0 0.0
    %1368 = vmatprep.subr.mxu0 0.0
    %1369 = vmatpush1.msra.mxu0 0.0
    %1370 = vmatprep.subr.mxu0 0.0
    %1371 = vmatpush1.msra.mxu0 0.0
    %1372 = vmatprep.subr.mxu0 0.0
    %1373 = vmatpush1.msra.mxu0 0.0
    %1374 = vmatprep.subr.mxu0 0.0
    %1375 = vmatpush1.msra.mxu0 0.0
    %1376 = vmatprep.subr.mxu0 0.0
    %1377 = vmatpush1.msra.mxu0 0.0
    %1378 = vmatprep.subr.mxu0 0.0
    %1379 = vmatpush1.msra.mxu0 0.0
    %1380 = vmatprep.subr.mxu0 0.0
    %1381 = vmatpush1.msra.mxu0 0.0
    %1382 = vmatprep.subr.mxu0 0.0
    %1383 = vmatpush1.msra.mxu0 0.0
    %1384 = vmatprep.subr.mxu0 0.0
    %1385 = vmatpush1.msra.mxu0 0.0
    %1386 = vmatprep.subr.mxu0 0.0
    %1387 = vmatpush1.msra.mxu0 0.0
    %1388 = vmatprep.mubr.f32.mxu0 0.0
    %1389 = vmatmul.mubr.f32.gmra.mrb[0].mxu0 %v76
    %v1390 = vpop.f32.mrb[0].mxu0
    %v1391 = vadd.f32 %v1321, %v1390
    %v1392 = vpop.f32.mrb[0].mxu0
    %1393 = vdwg.mxu0
    %1394 = vmax.xlane.f32.xlu0 %v1391
    %v1395 = vpop.xlane.xlu0 %1394
    %v1396 = vsub.f32 %v1391, %v1395
    %v1397 = vmul.f32 %v1396, 1.442695
    %v1398 = vpow.pop %v1397
    %1399 = vadd.xlane.f32.xlu0 %v1398
    %v1400 = vpop.xlane.xlu0 %1399
    %v1401 = vlog2.pop %v1400
    %v1402 = vmul.f32 %v1401, 0.6931472
    %v1403 = vsub.f32 %v1396, %v1402
    %1404 = vst [vmem:[#allocation8] sm:$0xff] %v1403
    // Predicated region
    $region26: #{tpu_custom_call.1} parent=1 // pred_check
      _
    $region27: #{tpu_custom_call.1} parent=1 // pred_check_branch
      %1406 = sbr.rel (0) target = $region29
    $region28: #{tpu_custom_call.1} parent=1 // pred_region
      %s1408 = ssub.s32 128, 128
      %1409 = vsyncadd [#allocation4], %s1408
      %s1411 = sshll.u32 [#allocation8], 4
      %s1412 = int_to_ptr.vmem [resolvable:$true] %s1411
      %1414 = dma.vmem_to_hbm [thread:$0]  %s1412, 128, %s3, [#allocation4]
    $region29: #{tpu_custom_call.1} parent=1 // pred_fallthru
      _
    // Predicated region
    $region30: #{tpu_custom_call.1} parent=1 // pred_check
      _
    $region31: #{tpu_custom_call.1} parent=1 // pred_check_branch
      %1416 = sbr.rel (0) target = $region33
    $region32: #{tpu_custom_call.1} parent=1 // pred_region
      %1417 = dma.done [#allocation4], 128
    $region33: #{tpu_custom_call.1} parent=1 // pred_fallthru
      _
    %1418 = vsyncpa [#allocation3], 1
    %1419 = vsyncpa [#allocation6], 1
    %1420 = vsyncpa [#allocation4], 1

</llo_original>
